<compile_context>
chip_gen: v5e
topology: v5e:2x2
jax: 0.10.0
libtpu: 0.0.40
codegen_flags: <defaults>
</compile_context>

<pallas_src>
import math
from functools import partial

import jax
import jax.numpy as jnp
from jax.experimental import pallas as pl
from jax.experimental.pallas import tpu as pltpu


# ---------------------------------------------------------------------------
# Fused multi-layer kernel: one grid step == (one batch tile, one layer).
# ---------------------------------------------------------------------------
def _gmlp_fused_kernel(*refs, n_params, fuse_proj1, last_only,
                       ln1_eps, ln2_eps, use_tanh_gelu, mxu_dtype):
    x_ref = refs[0]
    params = refs[1:1 + n_params]
    out_ref = refs[1 + n_params]
    act_ref = refs[2 + n_params]

    if fuse_proj1:
        (ln1_g, ln1_b, w1, b1,
         ln2_g, ln2_b, wp, bp, w2, b2) = params
    else:
        (ln1_g, ln1_b, w1u, b1u, w1v, b1v,
         ln2_g, ln2_b, wp, bp, w2, b2) = params

    layer = pl.program_id(1)
    tb, s, h = x_ref.shape                      # (TILE_B, S_pad, H) - static
    rows = tb * s

    # Load the fresh batch tile into the resident activation scratch at the
    # first layer of this batch tile; later layers reuse the previous layer's
    # result (no HBM round trip between layers).  NOTE: relies on the layer
    # axis being the innermost, sequentially executed ("arbitrary") grid axis.
    @pl.when(layer == 0)
    def _():
        act_ref[...] = x_ref[...].reshape(rows, h).astype(jnp.float32)

    def mm(a, b):
        if mxu_dtype is not None:               # bf16 MXU operands, f32 accumulate
            a = a.astype(mxu_dtype)
            b = b.astype(mxu_dtype)
        return jnp.dot(a, b, preferred_element_type=jnp.float32)

    def gelu(t):
        if use_tanh_gelu:                       # EUP tanh path (approximate)
            return 0.5 * t * (1.0 + jnp.tanh(
                0.7978845608028654 * (t + 0.044715 * t * t * t)))
        # exact erf-GELU == torch.nn.GELU() default
        return 0.5 * t * (1.0 + jax.lax.erf(t * 0.7071067811865476))

    def layernorm(t, gamma, beta, eps):
        mu = jnp.mean(t, axis=-1, keepdims=True)
        var = jnp.mean(t * t, axis=-1, keepdims=True) - mu * mu
        return (t - mu) * jax.lax.rsqrt(var + eps) * gamma + beta

    x = act_ref[...]                            # (rows, H) residual input

    # --- LayerNorm over hidden dim (eps = layer_norm_eps) -------------------
    y = layernorm(x, ln1_g[layer], ln1_b[layer], ln1_eps)

    # --- proj_1 + GELU -------------------------------------------------------
    if fuse_proj1:                              # C % 128 == 0: one wide matmul,
        r = gelu(mm(y, w1[layer]) + b1[layer])  # lane-aligned (free) slice
        c = r.shape[-1] // 2
        u = r[:, :c]
        v = r[:, c:]
    else:                                       # split weights: u/v born aligned
        u = gelu(mm(y, w1u[layer]) + b1u[layer])
        v = gelu(mm(y, w1v[layer]) + b1v[layer])
        c = v.shape[-1]

    # --- SpatialGatingUnit ---------------------------------------------------
    # LayerNorm over C (torch default eps = 1e-5)
    v = layernorm(v, ln2_g[layer], ln2_b[layer], ln2_eps)

    # Spatial projection along the sequence axis as ONE matmul:
    #   lay v out as (S, tile_b*C), do (S,S) @ (S, tile_b*C), undo the layout.
    #   vt[s, b*C + c] = v[b*S + s, c]
    if tb == 1:
        vt = v                                                     # (S, C)
    else:
        vt = jnp.concatenate(
            [v[b * s:(b + 1) * s, :] for b in range(tb)], axis=1)  # (S, tb*C)
    mixed = mm(wp[layer], vt) + bp[layer]       # (S, tb*C) + (S, 1) broadcast
    if tb == 1:
        vmix = mixed                                               # (S, C)
    else:
        vmix = jnp.concatenate(
            [mixed[:, b * c:(b + 1) * c] for b in range(tb)], axis=0)  # (rows,C)

    g = u * vmix                                # (rows, C)

    # --- proj_2: C -> H, residual --------------------------------------------
    o = mm(g, w2[layer]) + b2[layer]            # (rows, H)
    new = o + x
    act_ref[...] = new                          # stays resident for next layer

    if last_only:
        @pl.when(layer == pl.num_programs(1) - 1)
        def _():
            out_ref[...] = new.reshape(tb, s, h).astype(out_ref.dtype)
    else:
        out_ref[...] = new.reshape(tb, s, h).astype(out_ref.dtype)


# ---------------------------------------------------------------------------
# Tiling / VMEM helpers.
# ---------------------------------------------------------------------------
def _vmem_limit_bytes():
    """Device-aware VMEM budget (v5e/v6e: 128 MiB, v7x: 64 MiB per TC)."""
    cap = 128 * 1024 * 1024
    try:
        info = pltpu.get_tpu_info()
        cap = int(getattr(info, "vmem_capacity_bytes", cap))
    except Exception:
        cap = 64 * 1024 * 1024        # conservative fallback
    return min((cap * 3) // 4, 96 * 1024 * 1024)


def _pick_tile_b(B, S, H, vmem_budget, target_rows=512):
    """Largest divisor of B whose f32 activation block fits a slice of the VMEM
    budget (x block double-buffered + out block + scratch), stopping once
    tile_b*S reaches ~target_rows.  Keeps >=2 batch tiles when possible so the
    'parallel' axis can feed two TensorCores (v7x)."""
    max_block_bytes = max(vmem_budget // 10, 1 << 20)
    best = 1
    for cand in range(1, B + 1):
        if B % cand:
            continue
        if cand * S * H * 4 > max_block_bytes:
            break
        best = cand
        if cand * S >= target_rows:
            break
    while best > 1 and B // best < 2:
        nxt = 1
        for cand in range(1, best):
            if B % cand == 0:
                nxt = cand
        best = nxt
    return best


# ---------------------------------------------------------------------------
# Wrappers.
# ---------------------------------------------------------------------------
def gmlp_encoder_fused(x, sp, *, ln1_eps=1e-12, ln2_eps=1e-5,
                       use_tanh_gelu=False, mxu_dtype=jnp.bfloat16,
                       tile_b=None, output_all_encoded_layers=True):
    """Run all layers in one pallas_call.
    x: (B, S, H).  Returns (L, B, S, H) or (B, S, H) for last-layer-only."""
    B, S, H = x.shape
    L = sp["wp"].shape[0]
    fuse_proj1 = "w1" in sp

    # Pad S to a multiple of 8 so (tb,S,H)<->(tb*S,H) reshapes are
    # layout-preserving; Wp/bp are zero-padded so padded positions never
    # contaminate real rows.
    S_pad = -(-S // 8) * 8
    sp = dict(sp)
    if S_pad != S:
        pad = S_pad - S
        x = jnp.pad(x, ((0, 0), (0, pad), (0, 0)))
        sp["wp"] = jnp.pad(sp["wp"], ((0, 0), (0, pad), (0, pad)))
        sp["bp"] = jnp.pad(sp["bp"], ((0, 0), (0, pad), (0, 0)))

    vmem_limit = _vmem_limit_bytes()
    if tile_b is None:
        tile_b = _pick_tile_b(B, S_pad, H, vmem_limit)
    assert B % tile_b == 0, "tile_b must divide B (pad the batch if ragged)"
    rows = tile_b * S_pad

    names = (["ln1_g", "ln1_b", "w1", "b1"] if fuse_proj1
             else ["ln1_g", "ln1_b", "w1u", "b1u", "w1v", "b1v"])
    names += ["ln2_g", "ln2_b", "wp", "bp", "w2", "b2"]
    params = [sp[n] for n in names]

    last_only = not output_all_encoded_layers
    kernel = partial(_gmlp_fused_kernel, n_params=len(params),
                     fuse_proj1=fuse_proj1, last_only=last_only,
                     ln1_eps=ln1_eps, ln2_eps=ln2_eps,
                     use_tanh_gelu=use_tanh_gelu, mxu_dtype=mxu_dtype)

    # Resident params: full (L, ...) block with a CONSTANT index_map -> they
    # are DMA'd into VMEM once and never refetched; the kernel picks the layer
    # slice with ref[layer].
    def resident_spec(arr):
        nd = arr.ndim
        return pl.BlockSpec(arr.shape, lambda bt, l, nd=nd: (0,) * nd)

    if last_only:
        out_shape = jax.ShapeDtypeStruct((B, S_pad, H), x.dtype)
        out_spec = pl.BlockSpec((tile_b, S_pad, H), lambda bt, l: (bt, 0, 0))
    else:
        out_shape = jax.ShapeDtypeStruct((L, B, S_pad, H), x.dtype)
        out_spec = pl.BlockSpec((None, tile_b, S_pad, H),
                                lambda bt, l: (l, bt, 0, 0))

    out = pl.pallas_call(
        kernel,
        out_shape=out_shape,
        grid=(B // tile_b, L),
        in_specs=[pl.BlockSpec((tile_b, S_pad, H), lambda bt, l: (bt, 0, 0))]
                 + [resident_spec(p) for p in params],
        out_specs=out_spec,
        scratch_shapes=[pltpu.VMEM((rows, H), jnp.float32)],
        compiler_params=pltpu.CompilerParams(
            dimension_semantics=("parallel", "arbitrary"),
            vmem_limit_bytes=vmem_limit),
    )(x, *params)

    if S_pad != S:
        out = out[..., :S, :]
    return out


def gmlp_encoder(hidden_states, stacked_params, *, output_all_encoded_layers=True,
                 layer_norm_eps=1e-12, use_tanh_gelu=False,
                 mxu_dtype=jnp.bfloat16, tile_b=None):
    """Mirror of gMLPEncoder.forward (returns a list of per-layer outputs)."""
    out = gmlp_encoder_fused(
        hidden_states, stacked_params, ln1_eps=layer_norm_eps, ln2_eps=1e-5,
        use_tanh_gelu=use_tanh_gelu, mxu_dtype=mxu_dtype, tile_b=tile_b,
        output_all_encoded_layers=output_all_encoded_layers)
    if output_all_encoded_layers:
        return [out[i] for i in range(out.shape[0])]
    return [out]


# ---------------------------------------------------------------------------
# Parameter init (deterministic, synthetic) + host-side stacking for the kernel.
# ---------------------------------------------------------------------------
def init_gmlp_layer_params(key, hidden_size, seq_len, inner_size):
    """Synthetic params for one gMLPLayer (weights laid out as (in, out))."""
    H, S, I = hidden_size, seq_len, inner_size
    C = I // 2
    ks = jax.random.split(key, 10)
    scale = 0.02
    ln1_g = 1.0 + 0.1 * jax.random.normal(ks[0], (H,), jnp.float32)
    ln1_b = 0.1 * jax.random.normal(ks[1], (H,), jnp.float32)
    w1 = scale * jax.random.normal(ks[2], (H, I), jnp.float32)
    b1 = scale * jax.random.normal(ks[3], (I,), jnp.float32)
    ln2_g = 1.0 + 0.1 * jax.random.normal(ks[4], (C,), jnp.float32)
    ln2_b = 0.1 * jax.random.normal(ks[5], (C,), jnp.float32)
    wp = scale * jax.random.normal(ks[6], (S, S), jnp.float32)
    bp = scale * jax.random.normal(ks[7], (S,), jnp.float32)
    w2 = scale * jax.random.normal(ks[8], (C, H), jnp.float32)
    b2 = scale * jax.random.normal(ks[9], (H,), jnp.float32)
    return (ln1_g, ln1_b, w1, b1, ln2_g, ln2_b, wp, bp, w2, b2)


def stack_layer_params(layer_params):
    """Stack per-layer params on a leading layer axis.  W1/b1 stay fused when
    C % 128 == 0 (post-matmul slice is lane-aligned, free); otherwise they are
    split into u/v column halves so the halves are born lane-aligned."""
    L = len(layer_params)
    ln1_g = jnp.stack([p[0] for p in layer_params])     # (L, H)
    ln1_b = jnp.stack([p[1] for p in layer_params])     # (L, H)
    w1 = jnp.stack([p[2] for p in layer_params])        # (L, H, I)
    b1 = jnp.stack([p[3] for p in layer_params])        # (L, I)
    ln2_g = jnp.stack([p[4] for p in layer_params])     # (L, C)
    ln2_b = jnp.stack([p[5] for p in layer_params])     # (L, C)
    wp = jnp.stack([p[6] for p in layer_params])        # (L, S, S)
    bp = jnp.stack([p[7] for p in layer_params])        # (L, S)
    w2 = jnp.stack([p[8] for p in layer_params])        # (L, C, H)
    b2 = jnp.stack([p[9] for p in layer_params])        # (L, H)
    H = ln1_g.shape[-1]
    I = w1.shape[-1]
    C = I // 2
    S = wp.shape[-1]
    sp = dict(
        ln1_g=ln1_g.reshape(L, 1, H),
        ln1_b=ln1_b.reshape(L, 1, H),
        ln2_g=ln2_g.reshape(L, 1, C),
        ln2_b=ln2_b.reshape(L, 1, C),
        wp=wp,
        bp=bp.reshape(L, S, 1),
        w2=w2,
        b2=b2.reshape(L, 1, H),
    )
    if C % 128 == 0:
        sp.update(w1=w1, b1=b1.reshape(L, 1, I))
    else:
        sp.update(w1u=w1[:, :, :C], b1u=b1[:, :C].reshape(L, 1, C),
                  w1v=w1[:, :, C:], b1v=b1[:, C:].reshape(L, 1, C))
    return sp


# ---------------------------------------------------------------------------
# Pure-JAX reference (uses the unsplit, unstacked params).
# ---------------------------------------------------------------------------
def _layer_ref(x, params, ln1_eps=1e-12, ln2_eps=1e-5):
    (ln1_g, ln1_b, w1, b1, ln2_g, ln2_b, wp, bp, w2, b2) = params
    mu = jnp.mean(x, -1, keepdims=True)
    var = jnp.mean((x - mu) ** 2, -1, keepdims=True)
    y = (x - mu) / jnp.sqrt(var + ln1_eps) * ln1_g + ln1_b
    h = y @ w1 + b1
    h = 0.5 * h * (1.0 + jax.lax.erf(h / math.sqrt(2.0)))
    half = h.shape[-1] // 2
    u, v = h[..., :half], h[..., half:]
    mu2 = jnp.mean(v, -1, keepdims=True)
    var2 = jnp.mean((v - mu2) ** 2, -1, keepdims=True)
    v = (v - mu2) / jnp.sqrt(var2 + ln2_eps) * ln2_g + ln2_b
    v = jnp.einsum('st,btc->bsc', wp, v) + bp[None, :, None]
    g = u * v
    return g @ w2 + b2 + x


if __name__ == "__main__":
    def run_case(case_idx, B, S, H, I, n_layers):
        key = jax.random.fold_in(jax.random.PRNGKey(0), case_idx)
        kx, *kl = jax.random.split(key, 1 + n_layers)
        x = jax.random.normal(kx, (B, S, H), jnp.float32)
        layer_params = [init_gmlp_layer_params(kl[i], H, S, I)
                        for i in range(n_layers)]
        stacked = stack_layer_params(layer_params)

        # pure-JAX reference, layer by layer
        ref = x
        refs = []
        for p in layer_params:
            ref = _layer_ref(ref, p)
            refs.append(ref)

        # (a) exact path (f32 MXU, erf-GELU), all encoded layers: tight check
        outs = gmlp_encoder(x, stacked, output_all_encoded_layers=True,
                            use_tanh_gelu=False, mxu_dtype=None)
        outs = [jax.block_until_ready(o) for o in outs]
        for li, (o, r) in enumerate(zip(outs, refs)):
            assert o.shape == r.shape, f"case {case_idx}: shape mismatch L{li}"
            assert jnp.allclose(o, r, atol=2e-4, rtol=2e-4), \
                f"case {case_idx}: mismatch at layer {li} (exact path)"

        # (b) production path (bf16 MXU, tanh-GELU), last layer only: loose check
        last = gmlp_encoder(x, stacked, output_all_encoded_layers=False,
                            use_tanh_gelu=True, mxu_dtype=jnp.bfloat16)[0]
        last = jax.block_until_ready(last)
        assert jnp.allclose(last, refs[-1], atol=5e-2, rtol=5e-2), \
            f"case {case_idx}: mismatch on last layer (production path)"

    # Case 1: split proj_1 path (C=32), aligned S, tile_b=2 (two batch tiles).
    run_case(0, B=4, S=8, H=32, I=64, n_layers=2)
    # Case 2: fused proj_1 path (C=128), S=6 exercises sequence padding.
    run_case(1, B=2, S=6, H=32, I=256, n_layers=2)

    print("KERNEL_OK")
</pallas_src>

<mosaic_0001>
module attributes {stable_mosaic.version = 11 : i64} {
  func.func @_gmlp_fused_kernel(%arg0: i32, %arg1: i32, %arg2: memref<2x8x32xf32, #tpu.memory_space<vmem>>, %arg3: memref<2x1x32xf32, #tpu.memory_space<vmem>>, %arg4: memref<2x1x32xf32, #tpu.memory_space<vmem>>, %arg5: memref<2x32x32xf32, #tpu.memory_space<vmem>>, %arg6: memref<2x1x32xf32, #tpu.memory_space<vmem>>, %arg7: memref<2x32x32xf32, #tpu.memory_space<vmem>>, %arg8: memref<2x1x32xf32, #tpu.memory_space<vmem>>, %arg9: memref<2x1x32xf32, #tpu.memory_space<vmem>>, %arg10: memref<2x1x32xf32, #tpu.memory_space<vmem>>, %arg11: memref<2x8x8xf32, #tpu.memory_space<vmem>>, %arg12: memref<2x8x1xf32, #tpu.memory_space<vmem>>, %arg13: memref<2x32x32xf32, #tpu.memory_space<vmem>>, %arg14: memref<2x1x32xf32, #tpu.memory_space<vmem>>, %arg15: memref<1x2x8x32xf32, #tpu.memory_space<vmem>>, %arg16: memref<16x32xf32, #tpu.memory_space<vmem>>) attributes {dimension_semantics = [#tpu.dimension_semantics<parallel>, #tpu.dimension_semantics<arbitrary>], iteration_bounds = array<i64: 2, 2>, scalar_prefetch = 0 : i64, scratch_operands = 1 : i64, tpu.core_type = #tpu.core_type<tc>, window_params = [{transform_indices = @transform_0, window_bounds = array<i64: 2, 8, 32>}, {pipeline_mode = #tpu.pipeline_mode<synchronous>, transform_indices = @transform_1, window_bounds = array<i64: 2, 1, 32>}, {pipeline_mode = #tpu.pipeline_mode<synchronous>, transform_indices = @transform_2, window_bounds = array<i64: 2, 1, 32>}, {pipeline_mode = #tpu.pipeline_mode<synchronous>, transform_indices = @transform_3, window_bounds = array<i64: 2, 32, 32>}, {pipeline_mode = #tpu.pipeline_mode<synchronous>, transform_indices = @transform_4, window_bounds = array<i64: 2, 1, 32>}, {pipeline_mode = #tpu.pipeline_mode<synchronous>, transform_indices = @transform_5, window_bounds = array<i64: 2, 32, 32>}, {pipeline_mode = #tpu.pipeline_mode<synchronous>, transform_indices = @transform_6, window_bounds = array<i64: 2, 1, 32>}, {pipeline_mode = #tpu.pipeline_mode<synchronous>, transform_indices = @transform_7, window_bounds = array<i64: 2, 1, 32>}, {pipeline_mode = #tpu.pipeline_mode<synchronous>, transform_indices = @transform_8, window_bounds = array<i64: 2, 1, 32>}, {pipeline_mode = #tpu.pipeline_mode<synchronous>, transform_indices = @transform_9, window_bounds = array<i64: 2, 8, 8>}, {pipeline_mode = #tpu.pipeline_mode<synchronous>, transform_indices = @transform_10, window_bounds = array<i64: 2, 8, 1>}, {pipeline_mode = #tpu.pipeline_mode<synchronous>, transform_indices = @transform_11, window_bounds = array<i64: 2, 32, 32>}, {pipeline_mode = #tpu.pipeline_mode<synchronous>, transform_indices = @transform_12, window_bounds = array<i64: 2, 1, 32>}, {transform_indices = @transform_13, window_bounds = array<i64: 1, 2, 8, 32>}]} {
    %c0_i32 = arith.constant 0 : i32
    %0 = arith.cmpi eq, %arg1, %c0_i32 : i32
    %1 = arith.extui %0 : i1 to i32
    %c0_i32_0 = arith.constant 0 : i32
    %2 = arith.cmpi ne, %1, %c0_i32_0 : i32
    scf.if %2 {
      %c0_51 = arith.constant 0 : index
      %c0_52 = arith.constant 0 : index
      %c0_53 = arith.constant 0 : index
      %125 = vector.load %arg2[%c0_51, %c0_52, %c0_53] : memref<2x8x32xf32, #tpu.memory_space<vmem>>, vector<2x8x32xf32>
      %126 = vector.shape_cast %125 : vector<2x8x32xf32> to vector<16x32xf32>
      %c0_54 = arith.constant 0 : index
      %c0_55 = arith.constant 0 : index
      %127 = vector.load %arg16[%c0_54, %c0_55] : memref<16x32xf32, #tpu.memory_space<vmem>>, vector<16x32xf32>
      tpu.vector_store %arg16[%c0_54, %c0_55], %126 {strides = array<i32>} : memref<16x32xf32, #tpu.memory_space<vmem>>, vector<16x32xf32>,
    } else {
    }
    %c0 = arith.constant 0 : index
    %c0_1 = arith.constant 0 : index
    %3 = vector.load %arg16[%c0, %c0_1] : memref<16x32xf32, #tpu.memory_space<vmem>>, vector<16x32xf32>
    %4 = arith.index_cast %arg1 : i32 to index
    %c0_2 = arith.constant 0 : index
    %c0_3 = arith.constant 0 : index
    %5 = vector.load %arg3[%4, %c0_2, %c0_3] : memref<2x1x32xf32, #tpu.memory_space<vmem>>, vector<1x1x32xf32>
    %6 = vector.shape_cast %5 : vector<1x1x32xf32> to vector<1x32xf32>
    %7 = arith.index_cast %arg1 : i32 to index
    %c0_4 = arith.constant 0 : index
    %c0_5 = arith.constant 0 : index
    %8 = vector.load %arg4[%7, %c0_4, %c0_5] : memref<2x1x32xf32, #tpu.memory_space<vmem>>, vector<1x1x32xf32>
    %9 = vector.shape_cast %8 : vector<1x1x32xf32> to vector<1x32xf32>
    %cst = arith.constant dense<0.000000e+00> : vector<16xf32>
    %10 = vector.multi_reduction <add>, %3, %cst [1] : vector<16x32xf32> to vector<16xf32>
    %11 = vector.shape_cast %10 : vector<16xf32> to vector<16x1xf32>
    %cst_6 = arith.constant 3.200000e+01 : f32
    %12 = vector.broadcast %cst_6 : f32 to vector<16x1xf32>
    %13 = arith.divf %11, %12 : vector<16x1xf32>
    %14 = arith.mulf %3, %3 : vector<16x32xf32>
    %cst_7 = arith.constant dense<0.000000e+00> : vector<16xf32>
    %15 = vector.multi_reduction <add>, %14, %cst_7 [1] : vector<16x32xf32> to vector<16xf32>
    %16 = vector.shape_cast %15 : vector<16xf32> to vector<16x1xf32>
    %cst_8 = arith.constant 3.200000e+01 : f32
    %17 = vector.broadcast %cst_8 : f32 to vector<16x1xf32>
    %18 = arith.divf %16, %17 : vector<16x1xf32>
    %19 = arith.mulf %13, %13 : vector<16x1xf32>
    %20 = arith.subf %18, %19 : vector<16x1xf32>
    %21 = vector.broadcast %13 : vector<16x1xf32> to vector<16x32xf32>
    %22 = arith.subf %3, %21 : vector<16x32xf32>
    %cst_9 = arith.constant 9.99999996E-13 : f32
    %23 = vector.broadcast %cst_9 : f32 to vector<16x1xf32>
    %24 = arith.addf %20, %23 : vector<16x1xf32>
    %25 = math.rsqrt %24 : vector<16x1xf32>
    %26 = vector.broadcast %25 : vector<16x1xf32> to vector<16x32xf32>
    %27 = arith.mulf %22, %26 : vector<16x32xf32>
    %28 = vector.broadcast %6 : vector<1x32xf32> to vector<16x32xf32>
    %29 = arith.mulf %27, %28 : vector<16x32xf32>
    %30 = vector.broadcast %9 : vector<1x32xf32> to vector<16x32xf32>
    %31 = arith.addf %29, %30 : vector<16x32xf32>
    %32 = arith.index_cast %arg1 : i32 to index
    %c0_10 = arith.constant 0 : index
    %c0_11 = arith.constant 0 : index
    %33 = vector.load %arg5[%32, %c0_10, %c0_11] : memref<2x32x32xf32, #tpu.memory_space<vmem>>, vector<1x32x32xf32>
    %34 = vector.shape_cast %33 : vector<1x32x32xf32> to vector<32x32xf32>
    %cst_12 = arith.constant dense<0.000000e+00> : vector<16x32xf32>
    %35 = tpu.matmul %31, %34, %cst_12 {dimension_numbers = #tpu.dot_dimension_numbers<[1], [0], [0], [1], [0, 0, 1, 1], [], []>} : vector<16x32xf32>, vector<32x32xf32>, vector<16x32xf32> -> vector<16x32xf32>
    %36 = arith.index_cast %arg1 : i32 to index
    %c0_13 = arith.constant 0 : index
    %c0_14 = arith.constant 0 : index
    %37 = vector.load %arg6[%36, %c0_13, %c0_14] : memref<2x1x32xf32, #tpu.memory_space<vmem>>, vector<1x1x32xf32>
    %38 = vector.shape_cast %37 : vector<1x1x32xf32> to vector<1x32xf32>
    %39 = vector.broadcast %38 : vector<1x32xf32> to vector<16x32xf32>
    %40 = arith.addf %35, %39 : vector<16x32xf32>
    %cst_15 = arith.constant 5.000000e-01 : f32
    %41 = vector.broadcast %cst_15 : f32 to vector<16x32xf32>
    %42 = arith.mulf %41, %40 : vector<16x32xf32>
    %cst_16 = arith.constant 0.707106769 : f32
    %43 = vector.broadcast %cst_16 : f32 to vector<16x32xf32>
    %44 = arith.mulf %40, %43 : vector<16x32xf32>
    %45 = math.erf %44 : vector<16x32xf32>
    %cst_17 = arith.constant 1.000000e+00 : f32
    %46 = vector.broadcast %cst_17 : f32 to vector<16x32xf32>
    %47 = arith.addf %46, %45 : vector<16x32xf32>
    %48 = arith.mulf %42, %47 : vector<16x32xf32>
    %49 = arith.index_cast %arg1 : i32 to index
    %c0_18 = arith.constant 0 : index
    %c0_19 = arith.constant 0 : index
    %50 = vector.load %arg7[%49, %c0_18, %c0_19] : memref<2x32x32xf32, #tpu.memory_space<vmem>>, vector<1x32x32xf32>
    %51 = vector.shape_cast %50 : vector<1x32x32xf32> to vector<32x32xf32>
    %cst_20 = arith.constant dense<0.000000e+00> : vector<16x32xf32>
    %52 = tpu.matmul %31, %51, %cst_20 {dimension_numbers = #tpu.dot_dimension_numbers<[1], [0], [0], [1], [0, 0, 1, 1], [], []>} : vector<16x32xf32>, vector<32x32xf32>, vector<16x32xf32> -> vector<16x32xf32>
    %53 = arith.index_cast %arg1 : i32 to index
    %c0_21 = arith.constant 0 : index
    %c0_22 = arith.constant 0 : index
    %54 = vector.load %arg8[%53, %c0_21, %c0_22] : memref<2x1x32xf32, #tpu.memory_space<vmem>>, vector<1x1x32xf32>
    %55 = vector.shape_cast %54 : vector<1x1x32xf32> to vector<1x32xf32>
    %56 = vector.broadcast %55 : vector<1x32xf32> to vector<16x32xf32>
    %57 = arith.addf %52, %56 : vector<16x32xf32>
    %cst_23 = arith.constant 5.000000e-01 : f32
    %58 = vector.broadcast %cst_23 : f32 to vector<16x32xf32>
    %59 = arith.mulf %58, %57 : vector<16x32xf32>
    %cst_24 = arith.constant 0.707106769 : f32
    %60 = vector.broadcast %cst_24 : f32 to vector<16x32xf32>
    %61 = arith.mulf %57, %60 : vector<16x32xf32>
    %62 = math.erf %61 : vector<16x32xf32>
    %cst_25 = arith.constant 1.000000e+00 : f32
    %63 = vector.broadcast %cst_25 : f32 to vector<16x32xf32>
    %64 = arith.addf %63, %62 : vector<16x32xf32>
    %65 = arith.mulf %59, %64 : vector<16x32xf32>
    %66 = arith.index_cast %arg1 : i32 to index
    %c0_26 = arith.constant 0 : index
    %c0_27 = arith.constant 0 : index
    %67 = vector.load %arg9[%66, %c0_26, %c0_27] : memref<2x1x32xf32, #tpu.memory_space<vmem>>, vector<1x1x32xf32>
    %68 = vector.shape_cast %67 : vector<1x1x32xf32> to vector<1x32xf32>
    %69 = arith.index_cast %arg1 : i32 to index
    %c0_28 = arith.constant 0 : index
    %c0_29 = arith.constant 0 : index
    %70 = vector.load %arg10[%69, %c0_28, %c0_29] : memref<2x1x32xf32, #tpu.memory_space<vmem>>, vector<1x1x32xf32>
    %71 = vector.shape_cast %70 : vector<1x1x32xf32> to vector<1x32xf32>
    %cst_30 = arith.constant dense<0.000000e+00> : vector<16xf32>
    %72 = vector.multi_reduction <add>, %65, %cst_30 [1] : vector<16x32xf32> to vector<16xf32>
    %73 = vector.shape_cast %72 : vector<16xf32> to vector<16x1xf32>
    %cst_31 = arith.constant 3.200000e+01 : f32
    %74 = vector.broadcast %cst_31 : f32 to vector<16x1xf32>
    %75 = arith.divf %73, %74 : vector<16x1xf32>
    %76 = arith.mulf %65, %65 : vector<16x32xf32>
    %cst_32 = arith.constant dense<0.000000e+00> : vector<16xf32>
    %77 = vector.multi_reduction <add>, %76, %cst_32 [1] : vector<16x32xf32> to vector<16xf32>
    %78 = vector.shape_cast %77 : vector<16xf32> to vector<16x1xf32>
    %cst_33 = arith.constant 3.200000e+01 : f32
    %79 = vector.broadcast %cst_33 : f32 to vector<16x1xf32>
    %80 = arith.divf %78, %79 : vector<16x1xf32>
    %81 = arith.mulf %75, %75 : vector<16x1xf32>
    %82 = arith.subf %80, %81 : vector<16x1xf32>
    %83 = vector.broadcast %75 : vector<16x1xf32> to vector<16x32xf32>
    %84 = arith.subf %65, %83 : vector<16x32xf32>
    %cst_34 = arith.constant 9.99999974E-6 : f32
    %85 = vector.broadcast %cst_34 : f32 to vector<16x1xf32>
    %86 = arith.addf %82, %85 : vector<16x1xf32>
    %87 = math.rsqrt %86 : vector<16x1xf32>
    %88 = vector.broadcast %87 : vector<16x1xf32> to vector<16x32xf32>
    %89 = arith.mulf %84, %88 : vector<16x32xf32>
    %90 = vector.broadcast %68 : vector<1x32xf32> to vector<16x32xf32>
    %91 = arith.mulf %89, %90 : vector<16x32xf32>
    %92 = vector.broadcast %71 : vector<1x32xf32> to vector<16x32xf32>
    %93 = arith.addf %91, %92 : vector<16x32xf32>
    %94 = vector.extract_strided_slice %93 {offsets = [0, 0], sizes = [8, 32], strides = [1, 1]} : vector<16x32xf32> to vector<8x32xf32>
    %95 = vector.extract_strided_slice %93 {offsets = [8, 0], sizes = [8, 32], strides = [1, 1]} : vector<16x32xf32> to vector<8x32xf32>
    %96 = tpu.concatenate %94, %95 in 1 : vector<8x32xf32>, vector<8x32xf32> -> vector<8x64xf32>
    %97 = arith.index_cast %arg1 : i32 to index
    %c0_35 = arith.constant 0 : index
    %c0_36 = arith.constant 0 : index
    %98 = vector.load %arg11[%97, %c0_35, %c0_36] : memref<2x8x8xf32, #tpu.memory_space<vmem>>, vector<1x8x8xf32>
    %99 = vector.shape_cast %98 : vector<1x8x8xf32> to vector<8x8xf32>
    %cst_37 = arith.constant dense<0.000000e+00> : vector<8x64xf32>
    %100 = tpu.matmul %99, %96, %cst_37 {dimension_numbers = #tpu.dot_dimension_numbers<[1], [0], [0], [1], [0, 0, 1, 1], [], []>} : vector<8x8xf32>, vector<8x64xf32>, vector<8x64xf32> -> vector<8x64xf32>
    %101 = arith.index_cast %arg1 : i32 to index
    %c0_38 = arith.constant 0 : index
    %c0_39 = arith.constant 0 : index
    %102 = vector.load %arg12[%101, %c0_38, %c0_39] : memref<2x8x1xf32, #tpu.memory_space<vmem>>, vector<1x8x1xf32>
    %103 = vector.shape_cast %102 : vector<1x8x1xf32> to vector<8x1xf32>
    %104 = vector.broadcast %103 : vector<8x1xf32> to vector<8x64xf32>
    %105 = arith.addf %100, %104 : vector<8x64xf32>
    %106 = vector.extract_strided_slice %105 {offsets = [0, 0], sizes = [8, 32], strides = [1, 1]} : vector<8x64xf32> to vector<8x32xf32>
    %107 = vector.extract_strided_slice %105 {offsets = [0, 32], sizes = [8, 32], strides = [1, 1]} : vector<8x64xf32> to vector<8x32xf32>
    %108 = tpu.concatenate %106, %107 in 0 : vector<8x32xf32>, vector<8x32xf32> -> vector<16x32xf32>
    %109 = arith.mulf %48, %108 : vector<16x32xf32>
    %110 = arith.index_cast %arg1 : i32 to index
    %c0_40 = arith.constant 0 : index
    %c0_41 = arith.constant 0 : index
    %111 = vector.load %arg13[%110, %c0_40, %c0_41] : memref<2x32x32xf32, #tpu.memory_space<vmem>>, vector<1x32x32xf32>
    %112 = vector.shape_cast %111 : vector<1x32x32xf32> to vector<32x32xf32>
    %cst_42 = arith.constant dense<0.000000e+00> : vector<16x32xf32>
    %113 = tpu.matmul %109, %112, %cst_42 {dimension_numbers = #tpu.dot_dimension_numbers<[1], [0], [0], [1], [0, 0, 1, 1], [], []>} : vector<16x32xf32>, vector<32x32xf32>, vector<16x32xf32> -> vector<16x32xf32>
    %114 = arith.index_cast %arg1 : i32 to index
    %c0_43 = arith.constant 0 : index
    %c0_44 = arith.constant 0 : index
    %115 = vector.load %arg14[%114, %c0_43, %c0_44] : memref<2x1x32xf32, #tpu.memory_space<vmem>>, vector<1x1x32xf32>
    %116 = vector.shape_cast %115 : vector<1x1x32xf32> to vector<1x32xf32>
    %117 = vector.broadcast %116 : vector<1x32xf32> to vector<16x32xf32>
    %118 = arith.addf %113, %117 : vector<16x32xf32>
    %119 = arith.addf %118, %3 : vector<16x32xf32>
    %c0_45 = arith.constant 0 : index
    %c0_46 = arith.constant 0 : index
    %120 = vector.load %arg16[%c0_45, %c0_46] : memref<16x32xf32, #tpu.memory_space<vmem>>, vector<16x32xf32>
    tpu.vector_store %arg16[%c0_45, %c0_46], %119 {strides = array<i32>} : memref<16x32xf32, #tpu.memory_space<vmem>>, vector<16x32xf32>,
    %121 = vector.shape_cast %119 : vector<16x32xf32> to vector<2x8x32xf32>
    %c0_47 = arith.constant 0 : index
    %c0_48 = arith.constant 0 : index
    %c0_49 = arith.constant 0 : index
    %c0_50 = arith.constant 0 : index
    %122 = vector.load %arg15[%c0_47, %c0_48, %c0_49, %c0_50] : memref<1x2x8x32xf32, #tpu.memory_space<vmem>>, vector<1x2x8x32xf32>
    %123 = vector.shape_cast %122 : vector<1x2x8x32xf32> to vector<2x8x32xf32>
    %124 = vector.shape_cast %121 : vector<2x8x32xf32> to vector<1x2x8x32xf32>
    tpu.vector_store %arg15[%c0_47, %c0_48, %c0_49, %c0_50], %124 {strides = array<i32>} : memref<1x2x8x32xf32, #tpu.memory_space<vmem>>, vector<1x2x8x32xf32>,
    return
  }
  func.func @transform_0(%arg0: i32, %arg1: i32) -> (i32, i32, i32) {
    %c0_i32 = arith.constant 0 : i32
    %c0_i32_0 = arith.constant 0 : i32
    %c0_i32_1 = arith.constant 0 : i32
    return %arg0, %c0_i32, %c0_i32_0 : i32, i32, i32
  }
  func.func @transform_1(%arg0: i32, %arg1: i32) -> (i32, i32, i32) {
    %c0_i32 = arith.constant 0 : i32
    %c0_i32_0 = arith.constant 0 : i32
    %c0_i32_1 = arith.constant 0 : i32
    %c0_i32_2 = arith.constant 0 : i32
    return %c0_i32, %c0_i32_0, %c0_i32_1 : i32, i32, i32
  }
  func.func @transform_2(%arg0: i32, %arg1: i32) -> (i32, i32, i32) {
    %c0_i32 = arith.constant 0 : i32
    %c0_i32_0 = arith.constant 0 : i32
    %c0_i32_1 = arith.constant 0 : i32
    %c0_i32_2 = arith.constant 0 : i32
    return %c0_i32, %c0_i32_0, %c0_i32_1 : i32, i32, i32
  }
  func.func @transform_3(%arg0: i32, %arg1: i32) -> (i32, i32, i32) {
    %c0_i32 = arith.constant 0 : i32
    %c0_i32_0 = arith.constant 0 : i32
    %c0_i32_1 = arith.constant 0 : i32
    %c0_i32_2 = arith.constant 0 : i32
    return %c0_i32, %c0_i32_0, %c0_i32_1 : i32, i32, i32
  }
  func.func @transform_4(%arg0: i32, %arg1: i32) -> (i32, i32, i32) {
    %c0_i32 = arith.constant 0 : i32
    %c0_i32_0 = arith.constant 0 : i32
    %c0_i32_1 = arith.constant 0 : i32
    %c0_i32_2 = arith.constant 0 : i32
    return %c0_i32, %c0_i32_0, %c0_i32_1 : i32, i32, i32
  }
  func.func @transform_5(%arg0: i32, %arg1: i32) -> (i32, i32, i32) {
    %c0_i32 = arith.constant 0 : i32
    %c0_i32_0 = arith.constant 0 : i32
    %c0_i32_1 = arith.constant 0 : i32
    %c0_i32_2 = arith.constant 0 : i32
    return %c0_i32, %c0_i32_0, %c0_i32_1 : i32, i32, i32
  }
  func.func @transform_6(%arg0: i32, %arg1: i32) -> (i32, i32, i32) {
    %c0_i32 = arith.constant 0 : i32
    %c0_i32_0 = arith.constant 0 : i32
    %c0_i32_1 = arith.constant 0 : i32
    %c0_i32_2 = arith.constant 0 : i32
    return %c0_i32, %c0_i32_0, %c0_i32_1 : i32, i32, i32
  }
  func.func @transform_7(%arg0: i32, %arg1: i32) -> (i32, i32, i32) {
    %c0_i32 = arith.constant 0 : i32
    %c0_i32_0 = arith.constant 0 : i32
    %c0_i32_1 = arith.constant 0 : i32
    %c0_i32_2 = arith.constant 0 : i32
    return %c0_i32, %c0_i32_0, %c0_i32_1 : i32, i32, i32
  }
  func.func @transform_8(%arg0: i32, %arg1: i32) -> (i32, i32, i32) {
    %c0_i32 = arith.constant 0 : i32
    %c0_i32_0 = arith.constant 0 : i32
    %c0_i32_1 = arith.constant 0 : i32
    %c0_i32_2 = arith.constant 0 : i32
    return %c0_i32, %c0_i32_0, %c0_i32_1 : i32, i32, i32
  }
  func.func @transform_9(%arg0: i32, %arg1: i32) -> (i32, i32, i32) {
    %c0_i32 = arith.constant 0 : i32
    %c0_i32_0 = arith.constant 0 : i32
    %c0_i32_1 = arith.constant 0 : i32
    %c0_i32_2 = arith.constant 0 : i32
    return %c0_i32, %c0_i32_0, %c0_i32_1 : i32, i32, i32
  }
  func.func @transform_10(%arg0: i32, %arg1: i32) -> (i32, i32, i32) {
    %c0_i32 = arith.constant 0 : i32
    %c0_i32_0 = arith.constant 0 : i32
    %c0_i32_1 = arith.constant 0 : i32
    %c0_i32_2 = arith.constant 0 : i32
    return %c0_i32, %c0_i32_0, %c0_i32_1 : i32, i32, i32
  }
  func.func @transform_11(%arg0: i32, %arg1: i32) -> (i32, i32, i32) {
    %c0_i32 = arith.constant 0 : i32
    %c0_i32_0 = arith.constant 0 : i32
    %c0_i32_1 = arith.constant 0 : i32
    %c0_i32_2 = arith.constant 0 : i32
    return %c0_i32, %c0_i32_0, %c0_i32_1 : i32, i32, i32
  }
  func.func @transform_12(%arg0: i32, %arg1: i32) -> (i32, i32, i32) {
    %c0_i32 = arith.constant 0 : i32
    %c0_i32_0 = arith.constant 0 : i32
    %c0_i32_1 = arith.constant 0 : i32
    %c0_i32_2 = arith.constant 0 : i32
    return %c0_i32, %c0_i32_0, %c0_i32_1 : i32, i32, i32
  }
  func.func @transform_13(%arg0: i32, %arg1: i32) -> (i32, i32, i32, i32) {
    %c0_i32 = arith.constant 0 : i32
    %c0_i32_0 = arith.constant 0 : i32
    %c0_i32_1 = arith.constant 0 : i32
    return %arg1, %arg0, %c0_i32, %c0_i32_0 : i32, i32, i32, i32
  }
}

</mosaic_0001>

<llo_original>
// kernel: tpu_custom_call.1
$region0: #{tpu_custom_call.1}
  #allocation0 [shape = 'u32[]', space=smem, size = 0x4, offset = 0x4, fixed_abs, tag = 'smem constant byte address 0x4 - core index']
  #allocation1 [shape = 'u32[72,128]{1,0:T(1,128)}', space=vmem, size = 0x9000, scoped, tag = 'internal scratch']
  #allocation2 [shape = 'f32[16,32]{1,0:T(8,128)}', space=vmem, size = 0x2000, scoped, tag = 'scratch operand']
  %s0 = inlined_call_operand.hbm [shape: f32[4,8,32], index: 0, kind: input, shape index: {}]
  %s1 = inlined_call_operand.vmem [shape: f32[2,1,32], index: 1, kind: input, shape index: {}]
  %s2 = inlined_call_operand.hbm [shape: f32[2,1,32], index: 2, kind: input, shape index: {}]
  %s3 = inlined_call_operand.hbm [shape: f32[2,32,32], index: 3, kind: input, shape index: {}]
  %s4 = inlined_call_operand.hbm [shape: f32[2,1,32], index: 4, kind: input, shape index: {}]
  %s5 = inlined_call_operand.hbm [shape: f32[2,32,32], index: 5, kind: input, shape index: {}]
  %s6 = inlined_call_operand.vmem [shape: f32[2,1,32], index: 6, kind: input, shape index: {}]
  %s7 = inlined_call_operand.vmem [shape: f32[2,1,32], index: 7, kind: input, shape index: {}]
  %s8 = inlined_call_operand.hbm [shape: f32[2,1,32], index: 8, kind: input, shape index: {}]
  %s9 = inlined_call_operand.vmem [shape: f32[2,8,8], index: 9, kind: input, shape index: {}]
  %s10 = inlined_call_operand.vmem [shape: f32[2,8,1], index: 10, kind: input, shape index: {}]
  %s11 = inlined_call_operand.hbm [shape: f32[2,32,32], index: 11, kind: input, shape index: {}]
  %s12 = inlined_call_operand.vmem [shape: f32[2,1,32], index: 12, kind: input, shape index: {}]
  %s13 = inlined_call_operand.hbm [shape: f32[2,4,8,32], index: 13, kind: output, shape index: {}]
  %s14 = sld [smem:[#allocation0]]
  $region117: #{tpu_custom_call.1} parent=0
    _
  %s16 = ssub.s32 1, %s14
  %s17 = scalar_select 0, %s16, %s14
  $region1: #{tpu_custom_call.1} parent=0
    #allocation3 [shape = 'u8[16384]{0}', space=vmem, size = 0x4000, scoped, tag = 'input window, operand 0']
    #allocation4 [shape = 's32[2]{0}', space=sflag, size = 0x8, scoped, tag = 'scoped memory for tpu_custom_call.1']
    #allocation5 [shape = 's32[2]{0}', space=sflag, size = 0x8, scoped, tag = 'scoped memory for tpu_custom_call.1']
    #allocation6 [shape = 'u8[1024]{0}', space=vmem, size = 0x400, scoped, tag = 'input window, operand 2, single buffered']
    #allocation7 [shape = 's32[1]{0}', space=sflag, size = 0x4, scoped, tag = 'scoped memory for tpu_custom_call.1']
    #allocation8 [shape = 'u8[32768]{0}', space=vmem, size = 0x8000, scoped, tag = 'input window, operand 3, single buffered']
    #allocation9 [shape = 'u8[1024]{0}', space=vmem, size = 0x400, scoped, tag = 'input window, operand 4, single buffered']
    #allocation10 [shape = 's32[1]{0}', space=sflag, size = 0x4, scoped, tag = 'scoped memory for tpu_custom_call.1']
    #allocation11 [shape = 'u8[32768]{0}', space=vmem, size = 0x8000, scoped, tag = 'input window, operand 5, single buffered']
    #allocation12 [shape = 'u8[1024]{0}', space=vmem, size = 0x400, scoped, tag = 'input window, operand 8, single buffered']
    #allocation13 [shape = 's32[1]{0}', space=sflag, size = 0x4, scoped, tag = 'scoped memory for tpu_custom_call.1']
    #allocation14 [shape = 'u8[32768]{0}', space=vmem, size = 0x8000, scoped, tag = 'input window, operand 11, single buffered']
    #allocation15 [shape = 'u8[16384]{0}', space=vmem, size = 0x4000, scoped, tag = 'output window, operand 0']
    %18 = vsyncpa [#allocation4], 0
    %s19 = scalar_lea.sflag [#allocation4], 1
    %20 = vsyncpa %s19, 0
    %21 = vsyncpa [#allocation7], 0
    %22 = vsyncpa [#allocation10], 0
    %23 = vsyncpa [#allocation13], 0
    %24 = vsyncpa [#allocation5], 0
    %s25 = scalar_lea.sflag [#allocation5], 1
    %26 = vsyncpa %s25, 0
    loop: start=0, step=1, limit=6
    $region2: #{tpu_custom_call.1} parent=1 // loop_pre_header
      _
    $region3: #{tpu_custom_call.1} parent=1 // loop_header
      %s28 = sphi 0, %s32
      %p29 = scmp.ge.s32.totalorder %s28, 6
      %s35 = sphi 0, %s47
      %s36 = sphi 0, %s43
      %s37 = sphi 0, %s35
      %s38 = sphi 0, %s36
      %s39 = sphi 0, %s37
      %s40 = sphi 0, %s38
      %s50 = sphi 0, %s52
      %s53 = sphi 0, %s50
      %s54 = sphi 0, %s53
      %s70 = sphi 0, %s54
      %s74 = sphi 0, %s74
      %s76 = sphi 0, %s74
      %s77 = sphi 0, %s76
      %s91 = sphi 0, %s77
      %s95 = sphi 0, %s95
      %s97 = sphi 0, %s95
      %s98 = sphi 0, %s97
      %s112 = sphi 0, %s98
      %s116 = sphi 0, %s116
      %s118 = sphi 0, %s116
      %s119 = sphi 0, %s118
      %s133 = sphi 0, %s119
      %s137 = sphi 0, %s137
      %s139 = sphi 0, %s137
      %s140 = sphi 0, %s139
      %s154 = sphi 0, %s140
      %s158 = sphi 0, %s158
      %s160 = sphi 0, %s158
      %s161 = sphi 0, %s160
      %s175 = sphi 0, %s161
      %s179 = sphi 0, %s179
      %s181 = sphi 0, %s179
      %s182 = sphi 0, %s181
      %s196 = sphi 0, %s182
      %s200 = sphi 0, %s200
      %s202 = sphi 0, %s200
      %s203 = sphi 0, %s202
      %s217 = sphi 0, %s203
      %s221 = sphi 0, %s221
      %s223 = sphi 0, %s221
      %s224 = sphi 0, %s223
      %s238 = sphi 0, %s224
      %s242 = sphi 0, %s242
      %s244 = sphi 0, %s242
      %s245 = sphi 0, %s244
      %s259 = sphi 0, %s245
      %s263 = sphi 0, %s263
      %s265 = sphi 0, %s263
      %s266 = sphi 0, %s265
      %s280 = sphi 0, %s266
      %s284 = sphi 0, %s284
      %s286 = sphi 0, %s284
      %s287 = sphi 0, %s286
      %s301 = sphi 0, %s287
      %s305 = sphi 0, %s305
      %s307 = sphi 0, %s305
      %s308 = sphi 0, %s307
      %s322 = sphi 0, %s308
      %s330 = sphi 0, %s332
      %s333 = sphi 0, %s330
      %s334 = sphi 0, %s333
      %s350 = sphi 0, %s334
    $region4: #{tpu_custom_call.1} parent=1 // loop_header_branch
      %31 = sbr.rel (%p29) target = $region8
    $region5: #{tpu_custom_call.1} parent=1 // loop_body
      %s33 = ssub.s32 %s28, 1
      %s34 = ssub.s32 %s28, 2
      %s41 = sadd.s32 1, %s36
      %p42 = scmp.ge.s32.totalorder %s41, 2
      %s43 = scalar_select %p42, 0, %s41
      %s44 = sadd.s32 1, %s35
      %s45 = scalar_select %p42, %s44, %s35
      %p46 = scmp.ge.s32.totalorder %s45, 2
      %s47 = scalar_select %p46, 0, %s45
      %s48 = ssub.s32 %s35, %s47
      %p49 = scmp.eq.s32.totalorder %s48, 0
      %s51 = sadd.s32 %s50, 1
      %s52 = scalar_select %p49, %s50, %s51
      %p55 = pneg %p49
      %p56 = scmp.eq.s32.totalorder %s28, 3
      %p57 = por %p55, %p56
      %p58 = scmp.ne.s32.totalorder %s50, %s53
      %p59 = scmp.eq.s32.totalorder %s28, 0
      %p60 = por %p58, %p59
      %p61 = scmp.ne.s32.totalorder %s50, %s53
      %p62 = scmp.eq.s32.totalorder %s33, 3
      %p63 = por %p61, %p62
      %p64 = scmp.ne.s32.totalorder %s53, %s54
      %p65 = scmp.eq.s32.totalorder %s33, 0
      %p66 = por %p64, %p65
      %p67 = scmp.ne.s32.totalorder %s53, %s54
      %p68 = scmp.eq.s32.totalorder %s34, 3
      %p69 = por %p67, %p68
      %p71 = scmp.ne.s32.totalorder %s54, %s70
      %p72 = scmp.eq.s32.totalorder %s34, 0
      %p73 = por %p71, %p72
      %s75 = sadd.s32 %s74, 1
      %p78 = scmp.eq.s32.totalorder %s28, 3
      %p79 = scmp.ne.s32.totalorder %s74, %s76
      %p80 = scmp.eq.s32.totalorder %s28, 0
      %p81 = por %p79, %p80
      %p82 = scmp.ne.s32.totalorder %s74, %s76
      %p83 = scmp.eq.s32.totalorder %s33, 3
      %p84 = por %p82, %p83
      %p85 = scmp.ne.s32.totalorder %s76, %s77
      %p86 = scmp.eq.s32.totalorder %s33, 0
      %p87 = por %p85, %p86
      %p88 = scmp.ne.s32.totalorder %s76, %s77
      %p89 = scmp.eq.s32.totalorder %s34, 3
      %p90 = por %p88, %p89
      %p92 = scmp.ne.s32.totalorder %s77, %s91
      %p93 = scmp.eq.s32.totalorder %s34, 0
      %p94 = por %p92, %p93
      %s96 = sadd.s32 %s95, 1
      %p99 = scmp.eq.s32.totalorder %s28, 3
      %p100 = scmp.ne.s32.totalorder %s95, %s97
      %p101 = scmp.eq.s32.totalorder %s28, 0
      %p102 = por %p100, %p101
      %p103 = scmp.ne.s32.totalorder %s95, %s97
      %p104 = scmp.eq.s32.totalorder %s33, 3
      %p105 = por %p103, %p104
      %p106 = scmp.ne.s32.totalorder %s97, %s98
      %p107 = scmp.eq.s32.totalorder %s33, 0
      %p108 = por %p106, %p107
      %p109 = scmp.ne.s32.totalorder %s97, %s98
      %p110 = scmp.eq.s32.totalorder %s34, 3
      %p111 = por %p109, %p110
      %p113 = scmp.ne.s32.totalorder %s98, %s112
      %p114 = scmp.eq.s32.totalorder %s34, 0
      %p115 = por %p113, %p114
      %s117 = sadd.s32 %s116, 1
      %p120 = scmp.eq.s32.totalorder %s28, 3
      %p121 = scmp.ne.s32.totalorder %s116, %s118
      %p122 = scmp.eq.s32.totalorder %s28, 0
      %p123 = por %p121, %p122
      %p124 = scmp.ne.s32.totalorder %s116, %s118
      %p125 = scmp.eq.s32.totalorder %s33, 3
      %p126 = por %p124, %p125
      %p127 = scmp.ne.s32.totalorder %s118, %s119
      %p128 = scmp.eq.s32.totalorder %s33, 0
      %p129 = por %p127, %p128
      %p130 = scmp.ne.s32.totalorder %s118, %s119
      %p131 = scmp.eq.s32.totalorder %s34, 3
      %p132 = por %p130, %p131
      %p134 = scmp.ne.s32.totalorder %s119, %s133
      %p135 = scmp.eq.s32.totalorder %s34, 0
      %p136 = por %p134, %p135
      %s138 = sadd.s32 %s137, 1
      %p141 = scmp.eq.s32.totalorder %s28, 3
      %p142 = scmp.ne.s32.totalorder %s137, %s139
      %p143 = scmp.eq.s32.totalorder %s28, 0
      %p144 = por %p142, %p143
      %p145 = scmp.ne.s32.totalorder %s137, %s139
      %p146 = scmp.eq.s32.totalorder %s33, 3
      %p147 = por %p145, %p146
      %p148 = scmp.ne.s32.totalorder %s139, %s140
      %p149 = scmp.eq.s32.totalorder %s33, 0
      %p150 = por %p148, %p149
      %p151 = scmp.ne.s32.totalorder %s139, %s140
      %p152 = scmp.eq.s32.totalorder %s34, 3
      %p153 = por %p151, %p152
      %p155 = scmp.ne.s32.totalorder %s140, %s154
      %p156 = scmp.eq.s32.totalorder %s34, 0
      %p157 = por %p155, %p156
      %s159 = sadd.s32 %s158, 1
      %p162 = scmp.eq.s32.totalorder %s28, 3
      %p163 = scmp.ne.s32.totalorder %s158, %s160
      %p164 = scmp.eq.s32.totalorder %s28, 0
      %p165 = por %p163, %p164
      %p166 = scmp.ne.s32.totalorder %s158, %s160
      %p167 = scmp.eq.s32.totalorder %s33, 3
      %p168 = por %p166, %p167
      %p169 = scmp.ne.s32.totalorder %s160, %s161
      %p170 = scmp.eq.s32.totalorder %s33, 0
      %p171 = por %p169, %p170
      %p172 = scmp.ne.s32.totalorder %s160, %s161
      %p173 = scmp.eq.s32.totalorder %s34, 3
      %p174 = por %p172, %p173
      %p176 = scmp.ne.s32.totalorder %s161, %s175
      %p177 = scmp.eq.s32.totalorder %s34, 0
      %p178 = por %p176, %p177
      %s180 = sadd.s32 %s179, 1
      %p183 = scmp.eq.s32.totalorder %s28, 3
      %p184 = scmp.ne.s32.totalorder %s179, %s181
      %p185 = scmp.eq.s32.totalorder %s28, 0
      %p186 = por %p184, %p185
      %p187 = scmp.ne.s32.totalorder %s179, %s181
      %p188 = scmp.eq.s32.totalorder %s33, 3
      %p189 = por %p187, %p188
      %p190 = scmp.ne.s32.totalorder %s181, %s182
      %p191 = scmp.eq.s32.totalorder %s33, 0
      %p192 = por %p190, %p191
      %p193 = scmp.ne.s32.totalorder %s181, %s182
      %p194 = scmp.eq.s32.totalorder %s34, 3
      %p195 = por %p193, %p194
      %p197 = scmp.ne.s32.totalorder %s182, %s196
      %p198 = scmp.eq.s32.totalorder %s34, 0
      %p199 = por %p197, %p198
      %s201 = sadd.s32 %s200, 1
      %p204 = scmp.eq.s32.totalorder %s28, 3
      %p205 = scmp.ne.s32.totalorder %s200, %s202
      %p206 = scmp.eq.s32.totalorder %s28, 0
      %p207 = por %p205, %p206
      %p208 = scmp.ne.s32.totalorder %s200, %s202
      %p209 = scmp.eq.s32.totalorder %s33, 3
      %p210 = por %p208, %p209
      %p211 = scmp.ne.s32.totalorder %s202, %s203
      %p212 = scmp.eq.s32.totalorder %s33, 0
      %p213 = por %p211, %p212
      %p214 = scmp.ne.s32.totalorder %s202, %s203
      %p215 = scmp.eq.s32.totalorder %s34, 3
      %p216 = por %p214, %p215
      %p218 = scmp.ne.s32.totalorder %s203, %s217
      %p219 = scmp.eq.s32.totalorder %s34, 0
      %p220 = por %p218, %p219
      %s222 = sadd.s32 %s221, 1
      %p225 = scmp.eq.s32.totalorder %s28, 3
      %p226 = scmp.ne.s32.totalorder %s221, %s223
      %p227 = scmp.eq.s32.totalorder %s28, 0
      %p228 = por %p226, %p227
      %p229 = scmp.ne.s32.totalorder %s221, %s223
      %p230 = scmp.eq.s32.totalorder %s33, 3
      %p231 = por %p229, %p230
      %p232 = scmp.ne.s32.totalorder %s223, %s224
      %p233 = scmp.eq.s32.totalorder %s33, 0
      %p234 = por %p232, %p233
      %p235 = scmp.ne.s32.totalorder %s223, %s224
      %p236 = scmp.eq.s32.totalorder %s34, 3
      %p237 = por %p235, %p236
      %p239 = scmp.ne.s32.totalorder %s224, %s238
      %p240 = scmp.eq.s32.totalorder %s34, 0
      %p241 = por %p239, %p240
      %s243 = sadd.s32 %s242, 1
      %p246 = scmp.eq.s32.totalorder %s28, 3
      %p247 = scmp.ne.s32.totalorder %s242, %s244
      %p248 = scmp.eq.s32.totalorder %s28, 0
      %p249 = por %p247, %p248
      %p250 = scmp.ne.s32.totalorder %s242, %s244
      %p251 = scmp.eq.s32.totalorder %s33, 3
      %p252 = por %p250, %p251
      %p253 = scmp.ne.s32.totalorder %s244, %s245
      %p254 = scmp.eq.s32.totalorder %s33, 0
      %p255 = por %p253, %p254
      %p256 = scmp.ne.s32.totalorder %s244, %s245
      %p257 = scmp.eq.s32.totalorder %s34, 3
      %p258 = por %p256, %p257
      %p260 = scmp.ne.s32.totalorder %s245, %s259
      %p261 = scmp.eq.s32.totalorder %s34, 0
      %p262 = por %p260, %p261
      %s264 = sadd.s32 %s263, 1
      %p267 = scmp.eq.s32.totalorder %s28, 3
      %p268 = scmp.ne.s32.totalorder %s263, %s265
      %p269 = scmp.eq.s32.totalorder %s28, 0
      %p270 = por %p268, %p269
      %p271 = scmp.ne.s32.totalorder %s263, %s265
      %p272 = scmp.eq.s32.totalorder %s33, 3
      %p273 = por %p271, %p272
      %p274 = scmp.ne.s32.totalorder %s265, %s266
      %p275 = scmp.eq.s32.totalorder %s33, 0
      %p276 = por %p274, %p275
      %p277 = scmp.ne.s32.totalorder %s265, %s266
      %p278 = scmp.eq.s32.totalorder %s34, 3
      %p279 = por %p277, %p278
      %p281 = scmp.ne.s32.totalorder %s266, %s280
      %p282 = scmp.eq.s32.totalorder %s34, 0
      %p283 = por %p281, %p282
      %s285 = sadd.s32 %s284, 1
      %p288 = scmp.eq.s32.totalorder %s28, 3
      %p289 = scmp.ne.s32.totalorder %s284, %s286
      %p290 = scmp.eq.s32.totalorder %s28, 0
      %p291 = por %p289, %p290
      %p292 = scmp.ne.s32.totalorder %s284, %s286
      %p293 = scmp.eq.s32.totalorder %s33, 3
      %p294 = por %p292, %p293
      %p295 = scmp.ne.s32.totalorder %s286, %s287
      %p296 = scmp.eq.s32.totalorder %s33, 0
      %p297 = por %p295, %p296
      %p298 = scmp.ne.s32.totalorder %s286, %s287
      %p299 = scmp.eq.s32.totalorder %s34, 3
      %p300 = por %p298, %p299
      %p302 = scmp.ne.s32.totalorder %s287, %s301
      %p303 = scmp.eq.s32.totalorder %s34, 0
      %p304 = por %p302, %p303
      %s306 = sadd.s32 %s305, 1
      %p309 = scmp.eq.s32.totalorder %s28, 3
      %p310 = scmp.ne.s32.totalorder %s305, %s307
      %p311 = scmp.eq.s32.totalorder %s28, 0
      %p312 = por %p310, %p311
      %p313 = scmp.ne.s32.totalorder %s305, %s307
      %p314 = scmp.eq.s32.totalorder %s33, 3
      %p315 = por %p313, %p314
      %p316 = scmp.ne.s32.totalorder %s307, %s308
      %p317 = scmp.eq.s32.totalorder %s33, 0
      %p318 = por %p316, %p317
      %p319 = scmp.ne.s32.totalorder %s307, %s308
      %p320 = scmp.eq.s32.totalorder %s34, 3
      %p321 = por %p319, %p320
      %p323 = scmp.ne.s32.totalorder %s308, %s322
      %p324 = scmp.eq.s32.totalorder %s34, 0
      %p325 = por %p323, %p324
      %s326 = ssub.s32 %s36, %s43
      %s327 = ssub.s32 %s35, %s47
      %s328 = sor.u32 %s326, %s327
      %p329 = scmp.eq.s32.totalorder %s328, 0
      %s331 = sadd.s32 %s330, 1
      %s332 = scalar_select %p329, %s330, %s331
      %p335 = pneg %p329
      %p336 = scmp.eq.s32.totalorder %s28, 3
      %p337 = por %p335, %p336
      %p338 = scmp.ne.s32.totalorder %s330, %s333
      %p339 = scmp.eq.s32.totalorder %s28, 0
      %p340 = por %p338, %p339
      %p341 = scmp.ne.s32.totalorder %s330, %s333
      %p342 = scmp.eq.s32.totalorder %s33, 3
      %p343 = por %p341, %p342
      %p344 = scmp.ne.s32.totalorder %s333, %s334
      %p345 = scmp.eq.s32.totalorder %s33, 0
      %p346 = por %p344, %p345
      %p347 = scmp.ne.s32.totalorder %s333, %s334
      %p348 = scmp.eq.s32.totalorder %s34, 3
      %p349 = por %p347, %p348
      %p351 = scmp.ne.s32.totalorder %s334, %s350
      %p352 = scmp.eq.s32.totalorder %s34, 0
      %p353 = por %p351, %p352
      %p354 = scmp.le.s32.totalorder 1, %s28
      %p355 = scmp.lt.s32.totalorder %s28, 5
      %p356 = pnand %p354, %p355
      %p357 = pneg %p356
      // Predicated region
      $region9: #{tpu_custom_call.1} parent=5 // pred_check
        _
      $region10: #{tpu_custom_call.1} parent=5 // pred_check_branch
        %359 = sbr.rel (%p356) target = $region12
      $region11: #{tpu_custom_call.1} parent=5 // pred_region
        %s360 = ssub.s32 %s28, 1
        // Predicated region
        $region13: #{tpu_custom_call.1} parent=11 // pred_check
          %p361 = pneg %p87
        $region14: #{tpu_custom_call.1} parent=11 // pred_check_branch
          %363 = sbr.rel (%p361) target = $region16
        $region15: #{tpu_custom_call.1} parent=11 // pred_region
          _
        $region16: #{tpu_custom_call.1} parent=11 // pred_fallthru
          _
        // Predicated region
        $region17: #{tpu_custom_call.1} parent=11 // pred_check
          %p364 = pneg %p108
        $region18: #{tpu_custom_call.1} parent=11 // pred_check_branch
          %366 = sbr.rel (%p364) target = $region20
        $region19: #{tpu_custom_call.1} parent=11 // pred_region
          %368 = vsyncadd [#allocation7], 0
          %s369 = sshll.u32 %s2, 4
          %s370 = int_to_ptr.hbm [resolvable:$true] %s369
          %s371 = sshll.u32 [#allocation6], 4
          %s372 = int_to_ptr.vmem [resolvable:$true] %s371
          %377 = dma.hbm_to_vmem [thread:$0]  %s370, 32, %s372, [#allocation7], 16, 16, 1
        $region20: #{tpu_custom_call.1} parent=11 // pred_fallthru
          _
        // Predicated region
        $region21: #{tpu_custom_call.1} parent=11 // pred_check
          %p378 = pneg %p129
        $region22: #{tpu_custom_call.1} parent=11 // pred_check_branch
          %380 = sbr.rel (%p378) target = $region24
        $region23: #{tpu_custom_call.1} parent=11 // pred_region
          %382 = vsyncadd [#allocation7], 0
          %s383 = sshll.u32 %s3, 4
          %s384 = int_to_ptr.hbm [resolvable:$true] %s383
          %s385 = sshll.u32 [#allocation8], 4
          %s386 = int_to_ptr.vmem [resolvable:$true] %s385
          %391 = dma.hbm_to_vmem [thread:$0]  %s384, 1024, %s386, [#allocation7], 128, 128, 8
        $region24: #{tpu_custom_call.1} parent=11 // pred_fallthru
          _
        // Predicated region
        $region25: #{tpu_custom_call.1} parent=11 // pred_check
          %p392 = pneg %p150
        $region26: #{tpu_custom_call.1} parent=11 // pred_check_branch
          %394 = sbr.rel (%p392) target = $region28
        $region27: #{tpu_custom_call.1} parent=11 // pred_region
          %396 = vsyncadd [#allocation10], 0
          %s397 = sshll.u32 %s4, 4
          %s398 = int_to_ptr.hbm [resolvable:$true] %s397
          %s399 = sshll.u32 [#allocation9], 4
          %s400 = int_to_ptr.vmem [resolvable:$true] %s399
          %405 = dma.hbm_to_vmem [thread:$0]  %s398, 32, %s400, [#allocation10], 16, 16, 1
        $region28: #{tpu_custom_call.1} parent=11 // pred_fallthru
          _
        // Predicated region
        $region29: #{tpu_custom_call.1} parent=11 // pred_check
          %p406 = pneg %p171
        $region30: #{tpu_custom_call.1} parent=11 // pred_check_branch
          %408 = sbr.rel (%p406) target = $region32
        $region31: #{tpu_custom_call.1} parent=11 // pred_region
          %410 = vsyncadd [#allocation10], 0
          %s411 = sshll.u32 %s5, 4
          %s412 = int_to_ptr.hbm [resolvable:$true] %s411
          %s413 = sshll.u32 [#allocation11], 4
          %s414 = int_to_ptr.vmem [resolvable:$true] %s413
          %419 = dma.hbm_to_vmem [thread:$0]  %s412, 1024, %s414, [#allocation10], 128, 128, 8
        $region32: #{tpu_custom_call.1} parent=11 // pred_fallthru
          _
        // Predicated region
        $region33: #{tpu_custom_call.1} parent=11 // pred_check
          %p420 = pneg %p192
        $region34: #{tpu_custom_call.1} parent=11 // pred_check_branch
          %422 = sbr.rel (%p420) target = $region36
        $region35: #{tpu_custom_call.1} parent=11 // pred_region
          _
        $region36: #{tpu_custom_call.1} parent=11 // pred_fallthru
          _
        // Predicated region
        $region37: #{tpu_custom_call.1} parent=11 // pred_check
          %p423 = pneg %p213
        $region38: #{tpu_custom_call.1} parent=11 // pred_check_branch
          %425 = sbr.rel (%p423) target = $region40
        $region39: #{tpu_custom_call.1} parent=11 // pred_region
          _
        $region40: #{tpu_custom_call.1} parent=11 // pred_fallthru
          _
        // Predicated region
        $region41: #{tpu_custom_call.1} parent=11 // pred_check
          %p426 = pneg %p234
        $region42: #{tpu_custom_call.1} parent=11 // pred_check_branch
          %428 = sbr.rel (%p426) target = $region44
        $region43: #{tpu_custom_call.1} parent=11 // pred_region
          %430 = vsyncadd [#allocation13], 0
          %s431 = sshll.u32 %s8, 4
          %s432 = int_to_ptr.hbm [resolvable:$true] %s431
          %s433 = sshll.u32 [#allocation12], 4
          %s434 = int_to_ptr.vmem [resolvable:$true] %s433
          %439 = dma.hbm_to_vmem [thread:$0]  %s432, 32, %s434, [#allocation13], 16, 16, 1
        $region44: #{tpu_custom_call.1} parent=11 // pred_fallthru
          _
        // Predicated region
        $region45: #{tpu_custom_call.1} parent=11 // pred_check
          %p440 = pneg %p255
        $region46: #{tpu_custom_call.1} parent=11 // pred_check_branch
          %442 = sbr.rel (%p440) target = $region48
        $region47: #{tpu_custom_call.1} parent=11 // pred_region
          _
        $region48: #{tpu_custom_call.1} parent=11 // pred_fallthru
          _
        // Predicated region
        $region49: #{tpu_custom_call.1} parent=11 // pred_check
          %p443 = pneg %p276
        $region50: #{tpu_custom_call.1} parent=11 // pred_check_branch
          %445 = sbr.rel (%p443) target = $region52
        $region51: #{tpu_custom_call.1} parent=11 // pred_region
          _
        $region52: #{tpu_custom_call.1} parent=11 // pred_fallthru
          _
        // Predicated region
        $region53: #{tpu_custom_call.1} parent=11 // pred_check
          %p446 = pneg %p297
        $region54: #{tpu_custom_call.1} parent=11 // pred_check_branch
          %448 = sbr.rel (%p446) target = $region56
        $region55: #{tpu_custom_call.1} parent=11 // pred_region
          %450 = vsyncadd [#allocation13], 0
          %s451 = sshll.u32 %s11, 4
          %s452 = int_to_ptr.hbm [resolvable:$true] %s451
          %s453 = sshll.u32 [#allocation14], 4
          %s454 = int_to_ptr.vmem [resolvable:$true] %s453
          %459 = dma.hbm_to_vmem [thread:$0]  %s452, 1024, %s454, [#allocation13], 128, 128, 8
        $region56: #{tpu_custom_call.1} parent=11 // pred_fallthru
          _
        // Predicated region
        $region57: #{tpu_custom_call.1} parent=11 // pred_check
          %p460 = pneg %p318
        $region58: #{tpu_custom_call.1} parent=11 // pred_check_branch
          %462 = sbr.rel (%p460) target = $region60
        $region59: #{tpu_custom_call.1} parent=11 // pred_region
          _
        $region60: #{tpu_custom_call.1} parent=11 // pred_fallthru
          _
      $region12: #{tpu_custom_call.1} parent=5 // pred_fallthru
        _
      %p463 = scmp.lt.s32.totalorder %s28, 4
      // Predicated region
      $region61: #{tpu_custom_call.1} parent=5 // pred_check
        %p464 = pneg %p463
      $region62: #{tpu_custom_call.1} parent=5 // pred_check_branch
        %466 = sbr.rel (%p464) target = $region64
      $region63: #{tpu_custom_call.1} parent=5 // pred_region
        // Predicated region
        $region65: #{tpu_custom_call.1} parent=63 // pred_check
          %p467 = pneg %p60
        $region66: #{tpu_custom_call.1} parent=63 // pred_check_branch
          %469 = sbr.rel (%p467) target = $region68
        $region67: #{tpu_custom_call.1} parent=63 // pred_region
          %s470 = sand.u32 %s50, 1
          %s471 = scalar_lea.sflag [#allocation4], %s470
          %s472 = sand.u32 %s50, 1
          %s473 = smul.addr %s472, 16
          %s474 = scalar_lea.vmem [#allocation3], %s473
          %s475 = smul.u32 2, %s35
          %477 = vsyncadd %s471, 0
          %s478 = smul.addr %s475, 8
          %s479 = scalar_lea.hbm %s0, %s478
          %s480 = sshll.u32 %s479, 4
          %s481 = int_to_ptr.hbm [resolvable:$true] %s480
          %s482 = sshll.u32 %s474, 4
          %s483 = int_to_ptr.vmem [resolvable:$true] %s482
          %488 = dma.hbm_to_vmem [thread:$0]  %s481, 256, %s483, %s471, 128, 128, 8
        $region68: #{tpu_custom_call.1} parent=63 // pred_fallthru
          _
      $region64: #{tpu_custom_call.1} parent=5 // pred_fallthru
        _
      %p489 = scmp.le.s32.totalorder 1, %s28
      %p490 = scmp.lt.s32.totalorder %s28, 5
      %p491 = pnand %p489, %p490
      %p492 = pneg %p491
      // Predicated region
      $region69: #{tpu_custom_call.1} parent=5 // pred_check
        _
      $region70: #{tpu_custom_call.1} parent=5 // pred_check_branch
        %494 = sbr.rel (%p491) target = $region72
      $region71: #{tpu_custom_call.1} parent=5 // pred_region
        %s495 = ssub.s32 %s28, 1
        %s496 = sand.u32 %s53, 1
        %s497 = scalar_lea.sflag [#allocation4], %s496
        %s498 = sand.u32 %s53, 1
        %s499 = smul.addr %s498, 16
        %s500 = scalar_lea.vmem [#allocation3], %s499
        // Predicated region
        $region73: #{tpu_custom_call.1} parent=71 // pred_check
          %p501 = pneg %p66
        $region74: #{tpu_custom_call.1} parent=71 // pred_check_branch
          %503 = sbr.rel (%p501) target = $region76
        $region75: #{tpu_custom_call.1} parent=71 // pred_region
          %505 = dma.done %s497, 256
        $region76: #{tpu_custom_call.1} parent=71 // pred_fallthru
          _
        // Predicated region
        $region77: #{tpu_custom_call.1} parent=71 // pred_check
          %p506 = pneg %p108
        $region78: #{tpu_custom_call.1} parent=71 // pred_check_branch
          %508 = sbr.rel (%p506) target = $region80
        $region79: #{tpu_custom_call.1} parent=71 // pred_region
          %510 = dma.done [#allocation7], 32
        $region80: #{tpu_custom_call.1} parent=71 // pred_fallthru
          _
        // Predicated region
        $region81: #{tpu_custom_call.1} parent=71 // pred_check
          %p511 = pneg %p129
        $region82: #{tpu_custom_call.1} parent=71 // pred_check_branch
          %513 = sbr.rel (%p511) target = $region84
        $region83: #{tpu_custom_call.1} parent=71 // pred_region
          %515 = dma.done [#allocation7], 1024
        $region84: #{tpu_custom_call.1} parent=71 // pred_fallthru
          _
        // Predicated region
        $region85: #{tpu_custom_call.1} parent=71 // pred_check
          %p516 = pneg %p150
        $region86: #{tpu_custom_call.1} parent=71 // pred_check_branch
          %518 = sbr.rel (%p516) target = $region88
        $region87: #{tpu_custom_call.1} parent=71 // pred_region
          %520 = dma.done [#allocation10], 32
        $region88: #{tpu_custom_call.1} parent=71 // pred_fallthru
          _
        // Predicated region
        $region89: #{tpu_custom_call.1} parent=71 // pred_check
          %p521 = pneg %p171
        $region90: #{tpu_custom_call.1} parent=71 // pred_check_branch
          %523 = sbr.rel (%p521) target = $region92
        $region91: #{tpu_custom_call.1} parent=71 // pred_region
          %525 = dma.done [#allocation10], 1024
        $region92: #{tpu_custom_call.1} parent=71 // pred_fallthru
          _
        // Predicated region
        $region93: #{tpu_custom_call.1} parent=71 // pred_check
          %p526 = pneg %p234
        $region94: #{tpu_custom_call.1} parent=71 // pred_check_branch
          %528 = sbr.rel (%p526) target = $region96
        $region95: #{tpu_custom_call.1} parent=71 // pred_region
          %530 = dma.done [#allocation13], 32
        $region96: #{tpu_custom_call.1} parent=71 // pred_fallthru
          _
        // Predicated region
        $region97: #{tpu_custom_call.1} parent=71 // pred_check
          %p531 = pneg %p297
        $region98: #{tpu_custom_call.1} parent=71 // pred_check_branch
          %533 = sbr.rel (%p531) target = $region100
        $region99: #{tpu_custom_call.1} parent=71 // pred_region
          %535 = dma.done [#allocation13], 1024
        $region100: #{tpu_custom_call.1} parent=71 // pred_fallthru
          _
        %s536 = sand.u32 %s53, 1
        %s537 = scalar_lea.sflag [#allocation4], %s536
        %s538 = sand.u32 %s53, 1
        %s539 = smul.addr %s538, 16
        %s540 = scalar_lea.vmem [#allocation3], %s539
        %p541 = pneg %p66
        %p542 = pneg %p63
        %p543 = pneg %p87
        %p544 = pneg %p84
        %p545 = pneg %p108
        %p546 = pneg %p105
        %p547 = pneg %p129
        %p548 = pneg %p126
        %p549 = pneg %p150
        %p550 = pneg %p147
        %p551 = pneg %p171
        %p552 = pneg %p168
        %p553 = pneg %p192
        %p554 = pneg %p189
        %p555 = pneg %p213
        %p556 = pneg %p210
        %p557 = pneg %p234
        %p558 = pneg %p231
        %p559 = pneg %p255
        %p560 = pneg %p252
        %p561 = pneg %p276
        %p562 = pneg %p273
        %p563 = pneg %p297
        %p564 = pneg %p294
        %p565 = pneg %p318
        %p566 = pneg %p315
        %p567 = pneg %p346
        %p568 = pneg %p343
        %s569 = sand.u32 %s333, 1
        %s570 = scalar_lea.sflag [#allocation5], %s569
        %s571 = sand.u32 %s333, 1
        %s572 = smul.addr %s571, 16
        %s573 = scalar_lea.vmem [#allocation15], %s572
        %s574 = smul.u32 2, %s37
        %s575 = smul.u32 2, %s37
        %p576 = scmp.eq.s32.totalorder %s38, 0
        // Predicated region
        $region101: #{tpu_custom_call.1} parent=71 // pred_check
          %p577 = pneg %p576
        $region102: #{tpu_custom_call.1} parent=71 // pred_check_branch
          %579 = sbr.rel (%p577) target = $region104
        $region103: #{tpu_custom_call.1} parent=71 // pred_region
          %v580 = vld [vmem:[%s500] sm:$0xff]
          %v581 = vld [vmem:[%s500 + $0x8] sm:$0xff]
          %vm582 = vcmask 261120
          %583 = vst.msk [vmem:[#allocation2] sm:$0xff] %vm582, %v580
          %584 = vst.msk [vmem:[#allocation2 + $0x8] sm:$0xff] %vm582, %v581
        $region104: #{tpu_custom_call.1} parent=71 // pred_fallthru
          _
        %v585 = vld [vmem:[#allocation2] sm:$0xff]
        %v586 = vld [vmem:[#allocation2 + $0x8] sm:$0xff]
        %s587 = scalar_lea.vmem %s1, %s38
        %v588 = vld [vmem:[%s587] sm:$0x1]
        %s589 = scalar_lea.vmem [#allocation6], %s38
        %v590 = vld [vmem:[%s589] sm:$0x1]
        %vm591 = vcmask 261120
        %v592 = vsel %vm591, %v585, 0.0
        %593 = vadd.xlane.f32.xlu0 %v592
        %v594 = vpop.xlane.xlu0 %593
        %v595 = vsel %vm591, %v586, 0.0
        %596 = vadd.xlane.f32.xlu0 %v595
        %v597 = vpop.xlane.xlu0 %596
        %v598 = vrcp.pop 32.0
        %v599 = vmul.f32 32.0, %v598
        %v600 = vsub.f32 1.0, %v599
        %v601 = vmul.f32 %v598, %v600
        %v602 = vadd.f32 %v598, %v601
        %vm603 = vweird.f32 %v598
        %v604 = vsel %vm603, %v598, %v602
        %v605 = vmul.f32 %v594, %v604
        %v606 = vmul.f32 %v597, %v604
        %v607 = vmul.f32 %v585, %v585
        %v608 = vmul.f32 %v586, %v586
        %v609 = vsel %vm591, %v607, 0.0
        %610 = vadd.xlane.f32.xlu0 %v609
        %v611 = vpop.xlane.xlu0 %610
        %v612 = vsel %vm591, %v608, 0.0
        %613 = vadd.xlane.f32.xlu0 %v612
        %v614 = vpop.xlane.xlu0 %613
        %v615 = vmul.f32 %v611, %v604
        %v616 = vmul.f32 %v614, %v604
        %v617 = vmul.f32 %v605, %v605
        %v618 = vmul.f32 %v606, %v606
        %v619 = vsub.f32 %v615, %v617
        %v620 = vsub.f32 %v616, %v618
        %v621 = vsub.f32 %v585, %v605
        %v622 = vsub.f32 %v586, %v606
        %v623 = vadd.f32 %v619, 1e-12
        %v624 = vadd.f32 %v620, 1e-12
        %v625 = vrsqrt.pop %v623
        %v626 = vmul.f32 %v625, %v623
        %v627 = vmul.f32 %v626, %v625
        %v628 = vmul.f32 0.5, %v627
        %v629 = vsub.f32 1.5, %v628
        %v630 = vmul.f32 %v625, %v629
        %vm631 = vweird.f32 %v623
        %vm632 = vweird.f32 %v625
        %vm633 = vmor %vm631, %vm632
        %v634 = vsel %vm633, %v625, %v630
        %v635 = vrsqrt.pop %v624
        %v636 = vmul.f32 %v635, %v624
        %v637 = vmul.f32 %v636, %v635
        %v638 = vmul.f32 0.5, %v637
        %v639 = vsub.f32 1.5, %v638
        %v640 = vmul.f32 %v635, %v639
        %vm641 = vweird.f32 %v624
        %vm642 = vweird.f32 %v635
        %vm643 = vmor %vm641, %vm642
        %v644 = vsel %vm643, %v635, %v640
        %v645 = vmul.f32 %v621, %v634
        %v646 = vmul.f32 %v622, %v644
        %v648 = vperm.slane %v588, 0
        %v650 = vmul.f32 %v645, %v648
        %v651 = vmul.f32 %v646, %v648
        %v653 = vperm.slane %v590, 0
        %v655 = vadd.f32 %v650, %v653
        %v656 = vadd.f32 %v651, %v653
        %s657 = smul.u32 %s38, 32
        %s658 = scalar_lea.vmem [#allocation8], %s657
        %v659 = vld [vmem:[%s658] sm:$0xff]
        %v660 = vld [vmem:[%s658 + $0x8] sm:$0xff]
        %v661 = vld [vmem:[%s658 + $0x10] sm:$0xff]
        %v662 = vld [vmem:[%s658 + $0x18] sm:$0xff]
        %s663 = scalar_lea.vmem [#allocation9], %s38
        %v664 = vld [vmem:[%s663] sm:$0x1]
        %v666 = vperm.slane %v664, 0
        %v669 = vsel %vm591, %v655, 0
        %v672 = vsel %vm591, %v656, 0
        %674 = vmatpush.msra.mxu0 0.0
        %675 = vmatpush.msra.mxu0 0.0
        %676 = vmatpush.msra.mxu0 0.0
        %677 = vmatpush.msra.mxu0 0.0
        %678 = vmatpush.msra.mxu0 0.0
        %679 = vmatpush.msra.mxu0 0.0
        %680 = vmatpush.msra.mxu0 0.0
        %681 = vmatpush.msra.mxu0 0.0
        %682 = vmatpush.msra.mxu0 0.0
        %683 = vmatpush.msra.mxu0 0.0
        %684 = vmatpush.msra.mxu0 0.0
        %685 = vmatpush.msra.mxu0 0.0
        %686 = vmatpush.msra.mxu0 %v662
        %687 = vmatpush.msra.mxu0 %v661
        %688 = vmatpush.msra.mxu0 %v660
        %689 = vmatpush.msra.mxu0 %v659
        %690 = vmatmul.f32.gmra.mxu0 %v669
        %v691 = vpop.f32.mrf.mxu0
        %v692 = vadd.f32 %v666, %v691
        %693 = vmatmul.f32.gmra.mxu0 %v672
        %v694 = vpop.f32.mrf.mxu0
        %v695 = vadd.f32 %v666, %v694
        %696 = vdwg.mxu0
        %v697 = vmul.f32 %v692, 0.5
        %v698 = vmul.f32 %v695, 0.5
        %v699 = vmul.f32 %v692, 0.70710677
        %v700 = vmul.f32 %v695, 0.70710677
        %v701 = vmul.f32 %v699, %v699
        %v702 = vmin.f32 16.0, %v701
        %v703 = vmul.f32 %v702, 2.1237322e-06
        %v704 = vadd.f32 %v703, 0.00028619796
        %v705 = vmul.f32 %v702, %v704
        %v706 = vadd.f32 %v705, 0.0036580483
        %v707 = vmul.f32 %v702, %v706
        %v708 = vadd.f32 %v707, 0.05243302
        %v709 = vmul.f32 %v702, %v708
        %v710 = vadd.f32 %v709, 0.18741608
        %v711 = vmul.f32 %v702, %v710
        %v712 = vadd.f32 %v711, 1.1283791
        %v713 = vmul.f32 %v699, %v712
        %v714 = vmul.f32 %v702, 3.8918573e-05
        %v715 = vadd.f32 %v714, 0.001143296
        %v716 = vmul.f32 %v702, %v715
        %v717 = vadd.f32 %v716, 0.014752088
        %v718 = vmul.f32 %v702, %v717
        %v719 = vadd.f32 %v718, 0.112945676
        %v720 = vmul.f32 %v702, %v719
        %v721 = vadd.f32 %v720, 0.4994258
        %v722 = vmul.f32 %v702, %v721
        %v723 = vadd.f32 %v722, 1.0
        %v724 = vrcp.pop %v723
        %v725 = vmul.f32 %v723, %v724
        %v726 = vsub.f32 1.0, %v725
        %v727 = vmul.f32 %v724, %v726
        %v728 = vadd.f32 %v724, %v727
        %vm729 = vweird.f32 %v723
        %vm730 = vweird.f32 %v724
        %vm731 = vmor %vm729, %vm730
        %v732 = vsel %vm731, %v724, %v728
        %v733 = vand.u32 2147483647, %v723
        %vm734 = vcmp.eq.f32.partialorder %v733, 8.507059e+37
        %v735 = vand.u32 %v723, 2147483648
        %v736 = vor.u32 1.1754944e-38, %v735
        %v737 = vsel %vm734, %v736, %v732
        %v738 = vmul.f32 %v713, %v737
        %v739 = vmin.f32 %v738, 1.0
        %v740 = vmax.f32 %v739, -1.0
        %v741 = vmul.f32 %v700, %v700
        %v742 = vmin.f32 16.0, %v741
        %v743 = vmul.f32 %v742, 2.1237322e-06
        %v744 = vadd.f32 %v743, 0.00028619796
        %v745 = vmul.f32 %v742, %v744
        %v746 = vadd.f32 %v745, 0.0036580483
        %v747 = vmul.f32 %v742, %v746
        %v748 = vadd.f32 %v747, 0.05243302
        %v749 = vmul.f32 %v742, %v748
        %v750 = vadd.f32 %v749, 0.18741608
        %v751 = vmul.f32 %v742, %v750
        %v752 = vadd.f32 %v751, 1.1283791
        %v753 = vmul.f32 %v700, %v752
        %v754 = vmul.f32 %v742, 3.8918573e-05
        %v755 = vadd.f32 %v754, 0.001143296
        %v756 = vmul.f32 %v742, %v755
        %v757 = vadd.f32 %v756, 0.014752088
        %v758 = vmul.f32 %v742, %v757
        %v759 = vadd.f32 %v758, 0.112945676
        %v760 = vmul.f32 %v742, %v759
        %v761 = vadd.f32 %v760, 0.4994258
        %v762 = vmul.f32 %v742, %v761
        %v763 = vadd.f32 %v762, 1.0
        %v764 = vrcp.pop %v763
        %v765 = vmul.f32 %v763, %v764
        %v766 = vsub.f32 1.0, %v765
        %v767 = vmul.f32 %v764, %v766
        %v768 = vadd.f32 %v764, %v767
        %vm769 = vweird.f32 %v763
        %vm770 = vweird.f32 %v764
        %vm771 = vmor %vm769, %vm770
        %v772 = vsel %vm771, %v764, %v768
        %v773 = vand.u32 2147483647, %v763
        %vm774 = vcmp.eq.f32.partialorder %v773, 8.507059e+37
        %v775 = vand.u32 %v763, 2147483648
        %v776 = vor.u32 1.1754944e-38, %v775
        %v777 = vsel %vm774, %v776, %v772
        %v778 = vmul.f32 %v753, %v777
        %v779 = vmin.f32 %v778, 1.0
        %v780 = vmax.f32 %v779, -1.0
        %v781 = vadd.f32 %v740, 1.0
        %v782 = vadd.f32 %v780, 1.0
        %v783 = vmul.f32 %v697, %v781
        %v784 = vmul.f32 %v698, %v782
        %s785 = scalar_lea.vmem [#allocation11], %s657
        %v786 = vld [vmem:[%s785] sm:$0xff]
        %v787 = vld [vmem:[%s785 + $0x8] sm:$0xff]
        %v788 = vld [vmem:[%s785 + $0x10] sm:$0xff]
        %v789 = vld [vmem:[%s785 + $0x18] sm:$0xff]
        %s790 = scalar_lea.vmem %s6, %s38
        %v791 = vld [vmem:[%s790] sm:$0x1]
        %v793 = vperm.slane %v791, 0
        %795 = vmatpush.msra.mxu0 0.0
        %796 = vmatpush.msra.mxu0 0.0
        %797 = vmatpush.msra.mxu0 0.0
        %798 = vmatpush.msra.mxu0 0.0
        %799 = vmatpush.msra.mxu0 0.0
        %800 = vmatpush.msra.mxu0 0.0
        %801 = vmatpush.msra.mxu0 0.0
        %802 = vmatpush.msra.mxu0 0.0
        %803 = vmatpush.msra.mxu0 0.0
        %804 = vmatpush.msra.mxu0 0.0
        %805 = vmatpush.msra.mxu0 0.0
        %806 = vmatpush.msra.mxu0 0.0
        %807 = vmatpush.msra.mxu0 %v789
        %808 = vmatpush.msra.mxu0 %v788
        %809 = vmatpush.msra.mxu0 %v787
        %810 = vmatpush.msra.mxu0 %v786
        %811 = vmatmul.f32.gmra.mxu0 %v669
        %v812 = vpop.f32.mrf.mxu0
        %v813 = vadd.f32 %v793, %v812
        %814 = vmatmul.f32.gmra.mxu0 %v672
        %v815 = vpop.f32.mrf.mxu0
        %v816 = vadd.f32 %v793, %v815
        %817 = vdwg.mxu0
        %v818 = vmul.f32 %v813, 0.5
        %v819 = vmul.f32 %v816, 0.5
        %v820 = vmul.f32 %v813, 0.70710677
        %v821 = vmul.f32 %v816, 0.70710677
        %v822 = vmul.f32 %v820, %v820
        %v823 = vmin.f32 16.0, %v822
        %v824 = vmul.f32 %v823, 2.1237322e-06
        %v825 = vadd.f32 %v824, 0.00028619796
        %v826 = vmul.f32 %v823, %v825
        %v827 = vadd.f32 %v826, 0.0036580483
        %v828 = vmul.f32 %v823, %v827
        %v829 = vadd.f32 %v828, 0.05243302
        %v830 = vmul.f32 %v823, %v829
        %v831 = vadd.f32 %v830, 0.18741608
        %v832 = vmul.f32 %v823, %v831
        %v833 = vadd.f32 %v832, 1.1283791
        %v834 = vmul.f32 %v820, %v833
        %v835 = vmul.f32 %v823, 3.8918573e-05
        %v836 = vadd.f32 %v835, 0.001143296
        %v837 = vmul.f32 %v823, %v836
        %v838 = vadd.f32 %v837, 0.014752088
        %v839 = vmul.f32 %v823, %v838
        %v840 = vadd.f32 %v839, 0.112945676
        %v841 = vmul.f32 %v823, %v840
        %v842 = vadd.f32 %v841, 0.4994258
        %v843 = vmul.f32 %v823, %v842
        %v844 = vadd.f32 %v843, 1.0
        %v845 = vrcp.pop %v844
        %v846 = vmul.f32 %v844, %v845
        %v847 = vsub.f32 1.0, %v846
        %v848 = vmul.f32 %v845, %v847
        %v849 = vadd.f32 %v845, %v848
        %vm850 = vweird.f32 %v844
        %vm851 = vweird.f32 %v845
        %vm852 = vmor %vm850, %vm851
        %v853 = vsel %vm852, %v845, %v849
        %v854 = vand.u32 2147483647, %v844
        %vm855 = vcmp.eq.f32.partialorder %v854, 8.507059e+37
        %v856 = vand.u32 %v844, 2147483648
        %v857 = vor.u32 1.1754944e-38, %v856
        %v858 = vsel %vm855, %v857, %v853
        %v859 = vmul.f32 %v834, %v858
        %v860 = vmin.f32 %v859, 1.0
        %v861 = vmax.f32 %v860, -1.0
        %v862 = vmul.f32 %v821, %v821
        %v863 = vmin.f32 16.0, %v862
        %v864 = vmul.f32 %v863, 2.1237322e-06
        %v865 = vadd.f32 %v864, 0.00028619796
        %v866 = vmul.f32 %v863, %v865
        %v867 = vadd.f32 %v866, 0.0036580483
        %v868 = vmul.f32 %v863, %v867
        %v869 = vadd.f32 %v868, 0.05243302
        %v870 = vmul.f32 %v863, %v869
        %v871 = vadd.f32 %v870, 0.18741608
        %v872 = vmul.f32 %v863, %v871
        %v873 = vadd.f32 %v872, 1.1283791
        %v874 = vmul.f32 %v821, %v873
        %v875 = vmul.f32 %v863, 3.8918573e-05
        %v876 = vadd.f32 %v875, 0.001143296
        %v877 = vmul.f32 %v863, %v876
        %v878 = vadd.f32 %v877, 0.014752088
        %v879 = vmul.f32 %v863, %v878
        %v880 = vadd.f32 %v879, 0.112945676
        %v881 = vmul.f32 %v863, %v880
        %v882 = vadd.f32 %v881, 0.4994258
        %v883 = vmul.f32 %v863, %v882
        %v884 = vadd.f32 %v883, 1.0
        %v885 = vrcp.pop %v884
        %v886 = vmul.f32 %v884, %v885
        %v887 = vsub.f32 1.0, %v886
        %v888 = vmul.f32 %v885, %v887
        %v889 = vadd.f32 %v885, %v888
        %vm890 = vweird.f32 %v884
        %vm891 = vweird.f32 %v885
        %vm892 = vmor %vm890, %vm891
        %v893 = vsel %vm892, %v885, %v889
        %v894 = vand.u32 2147483647, %v884
        %vm895 = vcmp.eq.f32.partialorder %v894, 8.507059e+37
        %v896 = vand.u32 %v884, 2147483648
        %v897 = vor.u32 1.1754944e-38, %v896
        %v898 = vsel %vm895, %v897, %v893
        %v899 = vmul.f32 %v874, %v898
        %v900 = vmin.f32 %v899, 1.0
        %v901 = vmax.f32 %v900, -1.0
        %v902 = vadd.f32 %v861, 1.0
        %v903 = vadd.f32 %v901, 1.0
        %v904 = vmul.f32 %v818, %v902
        %v905 = vmul.f32 %v819, %v903
        %s906 = scalar_lea.vmem %s7, %s38
        %v907 = vld [vmem:[%s906] sm:$0x1]
        %s908 = scalar_lea.vmem [#allocation12], %s38
        %v909 = vld [vmem:[%s908] sm:$0x1]
        %v910 = vsel %vm591, %v904, 0.0
        %911 = vadd.xlane.f32.xlu0 %v910
        %v912 = vpop.xlane.xlu0 %911
        %v913 = vsel %vm591, %v905, 0.0
        %914 = vadd.xlane.f32.xlu0 %v913
        %v915 = vpop.xlane.xlu0 %914
        %v916 = vmul.f32 %v912, %v604
        %v917 = vmul.f32 %v915, %v604
        %v918 = vmul.f32 %v904, %v904
        %v919 = vmul.f32 %v905, %v905
        %v920 = vsel %vm591, %v918, 0.0
        %921 = vadd.xlane.f32.xlu0 %v920
        %v922 = vpop.xlane.xlu0 %921
        %v923 = vsel %vm591, %v919, 0.0
        %924 = vadd.xlane.f32.xlu0 %v923
        %v925 = vpop.xlane.xlu0 %924
        %v926 = vmul.f32 %v922, %v604
        %v927 = vmul.f32 %v925, %v604
        %v928 = vmul.f32 %v916, %v916
        %v929 = vmul.f32 %v917, %v917
        %v930 = vsub.f32 %v926, %v928
        %v931 = vsub.f32 %v927, %v929
        %v932 = vsub.f32 %v904, %v916
        %v933 = vsub.f32 %v905, %v917
        %v934 = vadd.f32 %v930, 1e-05
        %v935 = vadd.f32 %v931, 1e-05
        %v936 = vrsqrt.pop %v934
        %v937 = vmul.f32 %v936, %v934
        %v938 = vmul.f32 %v937, %v936
        %v939 = vmul.f32 0.5, %v938
        %v940 = vsub.f32 1.5, %v939
        %v941 = vmul.f32 %v936, %v940
        %vm942 = vweird.f32 %v934
        %vm943 = vweird.f32 %v936
        %vm944 = vmor %vm942, %vm943
        %v945 = vsel %vm944, %v936, %v941
        %v946 = vrsqrt.pop %v935
        %v947 = vmul.f32 %v946, %v935
        %v948 = vmul.f32 %v947, %v946
        %v949 = vmul.f32 0.5, %v948
        %v950 = vsub.f32 1.5, %v949
        %v951 = vmul.f32 %v946, %v950
        %vm952 = vweird.f32 %v935
        %vm953 = vweird.f32 %v946
        %vm954 = vmor %vm952, %vm953
        %v955 = vsel %vm954, %v946, %v951
        %v956 = vmul.f32 %v932, %v945
        %v957 = vmul.f32 %v933, %v955
        %v959 = vperm.slane %v907, 0
        %v961 = vmul.f32 %v956, %v959
        %v962 = vmul.f32 %v957, %v959
        %v964 = vperm.slane %v909, 0
        %v966 = vadd.f32 %v961, %v964
        %v967 = vadd.f32 %v962, %v964
        %969 = vrot.lane.b32.xlu0 %v967, 32
        %v970 = vpop.permute.xlu0 %969
        %v972 = vsel %vm591, %v966, %v970
        %s973 = smul.u32 %s38, 8
        %s974 = scalar_lea.vmem %s9, %s973
        %v975 = vld [vmem:[%s974] sm:$0xff]
        %s976 = scalar_lea.vmem %s10, %s973
        %v977 = vld [vmem:[%s976] sm:$0xff]
        %979 = vset.pattern.permute.xlu0 0
        %980 = vperm.xlu0 %979, %v977
        %v981 = vpop.permute.xlu0 %980
        %vm983 = vcmask 64512
        %v985 = vsel %vm983, %v975, 0
        %987 = vmatpush.msra.mxu0 0.0
        %988 = vmatpush.msra.mxu0 0.0
        %989 = vmatpush.msra.mxu0 0.0
        %990 = vmatpush.msra.mxu0 0.0
        %991 = vmatpush.msra.mxu0 0.0
        %992 = vmatpush.msra.mxu0 0.0
        %993 = vmatpush.msra.mxu0 0.0
        %994 = vmatpush.msra.mxu0 0.0
        %995 = vmatpush.msra.mxu0 0.0
        %996 = vmatpush.msra.mxu0 0.0
        %997 = vmatpush.msra.mxu0 0.0
        %998 = vmatpush.msra.mxu0 0.0
        %999 = vmatpush.msra.mxu0 0.0
        %1000 = vmatpush.msra.mxu0 0.0
        %1001 = vmatpush.msra.mxu0 0.0
        %1002 = vmatpush.msra.mxu0 %v972
        %1003 = vmatmul.f32.gmra.mxu0 %v985
        %v1004 = vpop.f32.mrf.mxu0
        %v1005 = vadd.f32 %v981, %v1004
        %1006 = vdwg.mxu0
        %1008 = vrot.lane.b32.xlu0 %v1005, 96
        %v1009 = vpop.permute.xlu0 %1008
        %v1011 = vmul.f32 %v783, %v1005
        %v1012 = vmul.f32 %v784, %v1009
        %s1013 = scalar_lea.vmem [#allocation14], %s657
        %v1014 = vld [vmem:[%s1013] sm:$0xff]
        %v1015 = vld [vmem:[%s1013 + $0x8] sm:$0xff]
        %v1016 = vld [vmem:[%s1013 + $0x10] sm:$0xff]
        %v1017 = vld [vmem:[%s1013 + $0x18] sm:$0xff]
        %s1018 = scalar_lea.vmem %s12, %s38
        %v1019 = vld [vmem:[%s1018] sm:$0x1]
        %v1021 = vperm.slane %v1019, 0
        %v1024 = vsel %vm591, %v1011, 0
        %v1027 = vsel %vm591, %v1012, 0
        %1029 = vmatpush.msra.mxu0 0.0
        %1030 = vmatpush.msra.mxu0 0.0
        %1031 = vmatpush.msra.mxu0 0.0
        %1032 = vmatpush.msra.mxu0 0.0
        %1033 = vmatpush.msra.mxu0 0.0
        %1034 = vmatpush.msra.mxu0 0.0
        %1035 = vmatpush.msra.mxu0 0.0
        %1036 = vmatpush.msra.mxu0 0.0
        %1037 = vmatpush.msra.mxu0 0.0
        %1038 = vmatpush.msra.mxu0 0.0
        %1039 = vmatpush.msra.mxu0 0.0
        %1040 = vmatpush.msra.mxu0 0.0
        %1041 = vmatpush.msra.mxu0 %v1017
        %1042 = vmatpush.msra.mxu0 %v1016
        %1043 = vmatpush.msra.mxu0 %v1015
        %1044 = vmatpush.msra.mxu0 %v1014
        %1045 = vmatmul.f32.gmra.mxu0 %v1024
        %v1046 = vpop.f32.mrf.mxu0
        %v1047 = vadd.f32 %v1021, %v1046
        %1048 = vmatmul.f32.gmra.mxu0 %v1027
        %v1049 = vpop.f32.mrf.mxu0
        %v1050 = vadd.f32 %v1021, %v1049
        %1051 = vdwg.mxu0
        %v1052 = vadd.f32 %v1047, %v585
        %v1053 = vadd.f32 %v1050, %v586
        %1054 = vst.msk [vmem:[#allocation2] sm:$0xff] %vm591, %v1052
        %1055 = vst.msk [vmem:[#allocation2 + $0x8] sm:$0xff] %vm591, %v1053
        %1056 = vst.msk [vmem:[%s573] sm:$0xff] %vm591, %v1052
        %1057 = vst.msk [vmem:[%s573 + $0x8] sm:$0xff] %vm591, %v1053
        %s1058 = sand.u32 %s333, 1
        %s1059 = scalar_lea.sflag [#allocation5], %s1058
        %s1060 = sand.u32 %s333, 1
        %s1061 = smul.addr %s1060, 16
        %s1062 = scalar_lea.vmem [#allocation15], %s1061
        // Predicated region
        $region105: #{tpu_custom_call.1} parent=71 // pred_check
          %p1063 = pneg %p343
        $region106: #{tpu_custom_call.1} parent=71 // pred_check_branch
          %1065 = sbr.rel (%p1063) target = $region108
        $region107: #{tpu_custom_call.1} parent=71 // pred_region
          %s1066 = smul.u32 2, %s37
          %1068 = vsyncadd %s1059, 0
          %s1069 = smul.addr %s38, 4
          %s1070 = sadd.s32 %s1066, %s1069
          %s1071 = smul.addr %s1070, 8
          %s1072 = scalar_lea.hbm %s13, %s1071
          %s1073 = sshll.u32 %s1062, 4
          %s1074 = int_to_ptr.vmem [resolvable:$true] %s1073
          %s1075 = sshll.u32 %s1072, 4
          %s1076 = int_to_ptr.hbm [resolvable:$true] %s1075
          %1081 = dma.vmem_to_hbm [thread:$0]  %s1074, 256, %s1076, %s1059, 128, 128, 8
        $region108: #{tpu_custom_call.1} parent=71 // pred_fallthru
          _
      $region72: #{tpu_custom_call.1} parent=5 // pred_fallthru
        _
      %p1082 = scmp.le.s32.totalorder 2, %s28
      // Predicated region
      $region109: #{tpu_custom_call.1} parent=5 // pred_check
        %p1083 = pneg %p1082
      $region110: #{tpu_custom_call.1} parent=5 // pred_check_branch
        %1085 = sbr.rel (%p1083) target = $region112
      $region111: #{tpu_custom_call.1} parent=5 // pred_region
        %s1086 = ssub.s32 %s28, 2
        // Predicated region
        $region113: #{tpu_custom_call.1} parent=111 // pred_check
          %p1087 = pneg %p349
        $region114: #{tpu_custom_call.1} parent=111 // pred_check_branch
          %1089 = sbr.rel (%p1087) target = $region116
        $region115: #{tpu_custom_call.1} parent=111 // pred_region
          %s1090 = sand.u32 %s334, 1
          %s1091 = scalar_lea.sflag [#allocation5], %s1090
          %s1092 = sand.u32 %s334, 1
          %s1093 = smul.addr %s1092, 16
          %s1094 = scalar_lea.vmem [#allocation15], %s1093
          %1096 = dma.done %s1091, 256
        $region116: #{tpu_custom_call.1} parent=111 // pred_fallthru
          _
      $region112: #{tpu_custom_call.1} parent=5 // pred_fallthru
        _
    $region6: #{tpu_custom_call.1} parent=1 // loop_footer
      %s32 = sadd.s32 1, %s28
    $region7: #{tpu_custom_call.1} parent=1 // loop_footer_branch
      %27 = sbr.rel target = $region3
    $region8: #{tpu_custom_call.1} parent=1 // loop_exit
      _
    %1097 = vsyncpa [#allocation4], 1
    %s1098 = scalar_lea.sflag [#allocation4], 1
    %1099 = vsyncpa %s1098, 1
    %1100 = vsyncpa [#allocation7], 1
    %1101 = vsyncpa [#allocation10], 1
    %1102 = vsyncpa [#allocation13], 1
    %1103 = vsyncpa [#allocation5], 1
    %s1104 = scalar_lea.sflag [#allocation5], 1
    %1105 = vsyncpa %s1104, 1

</llo_original>
